<compile_context>
chip_gen: v5e
topology: v5e:2x2
jax: 0.10.0
libtpu: 0.0.40
codegen_flags: <defaults>
</compile_context>

<pallas_src>
import functools

import jax
import jax.numpy as jnp
from jax import lax
from jax.experimental import pallas as pl
from jax.experimental.pallas import tpu as pltpu

LN_EPS = 1e-5                       # nn.LayerNorm default
_INV_SQRT2 = 0.7071067811865476     # 1/sqrt(2) for exact (erf) GELU


def _ffn_kernel(x_ref, g_ref, beta_ref, w1_ref, b1_ref, w2_ref, b2_ref,
                o_ref, *scratch, acc_in_out: bool):
    if acc_in_out:
        (xn_ref,) = scratch
        acc_ref = o_ref                 # f32 output block is the accumulator
    else:
        xn_ref, acc_ref = scratch

    j = pl.program_id(1)

    # Hidden step 0: LayerNorm this row tile once (f32 math), stash a bf16 copy for
    # the MXU, and zero the accumulator.  Garbage tail rows (partial last row tile)
    # stay row-local and are masked off on writeback, so any junk there is benign.
    @pl.when(j == 0)
    def _():
        x = x_ref[...].astype(jnp.float32)
        mean = jnp.mean(x, axis=-1, keepdims=True)
        var = jnp.mean((x - mean) ** 2, axis=-1, keepdims=True)
        xn = (x - mean) * lax.rsqrt(var + LN_EPS)
        xn = xn * g_ref[...] + beta_ref[...]
        xn_ref[...] = xn.astype(xn_ref.dtype)
        acc_ref[...] = jnp.zeros_like(acc_ref)

    # Linear(dim -> hidden_tile): bf16 operands, f32 accumulate on the MXU.
    h = jnp.dot(xn_ref[...], w1_ref[...],
                preferred_element_type=jnp.float32) + b1_ref[...]

    # GELU (exact / erf form, matching nn.GELU() default), f32 elementwise.
    h = 0.5 * h * (1.0 + lax.erf(h * _INV_SQRT2))

    # Linear(hidden_tile -> dim): accumulate in f32 (output block or scratch).
    acc_ref[...] += jnp.dot(h.astype(w2_ref.dtype), w2_ref[...],
                            preferred_element_type=jnp.float32)

    # Last hidden step: add output bias (and cast if accumulating in scratch).
    @pl.when(j == pl.num_programs(1) - 1)
    def _():
        if acc_in_out:
            o_ref[...] = o_ref[...] + b2_ref[...]
        else:
            o_ref[...] = (acc_ref[...] + b2_ref[...]).astype(o_ref.dtype)


def _round_up(a, b):
    return ((a + b - 1) // b) * b


def _chip_defaults():
    """Per-generation (row_tile, hidden_tile, vmem_cap_bytes) targets."""
    try:
        kind = jax.devices()[0].device_kind.lower()
    except Exception:
        kind = ""
    if "v7" in kind:
        return 512, 256, 52 << 20       # 64 MiB/TC VMEM: leave Mosaic headroom
    if "v6" in kind:
        return 768, 512, 110 << 20      # 128 MiB VMEM; ~680 FLOP/B MXU roofline
    if "v5e" in kind or "v5 lite" in kind or "v5lite" in kind:
        return 512, 512, 100 << 20      # 128 MiB VMEM; ~240 FLOP/B roofline
    return 512, 256, 48 << 20           # unknown chip: conservative


def _pick_hidden_tile(hidden, target):
    """Largest 128-multiple divisor of hidden <= target (or full hidden if not 128-aligned)."""
    if hidden % 128 != 0:
        return hidden                   # full extent required by the (8,128) rule
    target = max(128, min(target, hidden))
    target = (target // 128) * 128
    ht = target
    while ht >= 128:
        if hidden % ht == 0:
            return ht
        ht -= 128
    return 128


def _pick_row_tile(rows, target):
    """Row tile: full extent for small rows, else a multiple of 8 (divisor preferred)."""
    if rows <= target:
        return rows                     # full-extent block, always legal
    target = max(8, (target // 8) * 8)
    rt = target
    while rt >= max(8, target // 2):    # prefer a divisor (no partial tail block)
        if rows % rt == 0:
            return rt
        rt -= 8
    return target                       # cdiv grid handles the partial tail block


def _vmem_need(row_tile, hidden_tile, dim, itemsize, acc_in_out):
    """Bytes of VMEM for double-buffered blocks + scratches (already includes buffering)."""
    return (2 * row_tile * dim * itemsize          # x blocks
            + 2 * row_tile * dim * itemsize        # out blocks
            + 2 * dim * hidden_tile * 2            # W1 tile (bf16)
            + 2 * hidden_tile * dim * 2            # W2 tile (bf16)
            + row_tile * dim * 2                   # xn scratch (bf16)
            + (0 if acc_in_out else row_tile * dim * 4)   # acc scratch (f32)
            + 2 * (3 * dim + hidden_tile) * 4)     # gamma/beta/b2 + b1 blocks


@functools.partial(jax.jit, static_argnames=("row_tile", "hidden_tile"))
def ffn_pallas(x, gamma, beta, w1, b1, w2, b2, *, row_tile=None, hidden_tile=None):
    """x: (batch, seq, dim). Weights follow x @ W convention (W1: (dim, hidden))."""
    batch, seq, dim = x.shape
    hidden = w1.shape[1]
    rows = batch * seq
    itemsize = x.dtype.itemsize

    # f32 outputs accumulate directly into the resident output block; narrower output
    # dtypes keep a dedicated f32 scratch accumulator.
    acc_in_out = (x.dtype == jnp.float32)

    # --- per-generation tile sizing + VMEM budget --------------------------
    def_rt, def_ht, vmem_cap = _chip_defaults()
    row_tile = _pick_row_tile(rows, def_rt if row_tile is None else row_tile)
    hidden_tile = _pick_hidden_tile(hidden, def_ht if hidden_tile is None else hidden_tile)

    budget = vmem_cap - (4 << 20)
    while _vmem_need(row_tile, hidden_tile, dim, itemsize, acc_in_out) > budget:
        if hidden_tile > 128 and hidden % 128 == 0:
            hidden_tile = _pick_hidden_tile(hidden, hidden_tile - 128)
        elif row_tile > 8:
            row_tile = max(8, ((row_tile // 2) // 8) * 8)
        else:
            break

    n_row_tiles = pl.cdiv(rows, row_tile)
    n_hidden_tiles = hidden // hidden_tile
    rows_p = n_row_tiles * row_tile
    grid = (n_row_tiles, n_hidden_tiles)

    vmem_need = _vmem_need(row_tile, hidden_tile, dim, itemsize, acc_in_out)
    vmem_limit = int(min(vmem_cap, max(vmem_need + (4 << 20), 32 << 20)))

    # --- operand prep (no padding of x; cdiv grid handles the tail block) --
    x2d = x.reshape(rows, dim)
    g2d = gamma.reshape(1, dim).astype(jnp.float32)
    beta2d = beta.reshape(1, dim).astype(jnp.float32)
    b1_2d = b1.reshape(1, hidden).astype(jnp.float32)
    b2_2d = b2.reshape(1, dim).astype(jnp.float32)
    w1_bf = w1.astype(jnp.bfloat16)     # MXU-peak dtype; halves weight DMA/VMEM
    w2_bf = w2.astype(jnp.bfloat16)

    # --- scheduling hints ---------------------------------------------------
    cost = pl.CostEstimate(
        flops=4 * rows_p * dim * hidden,                  # two matmuls, 2 flops/MAC
        transcendentals=rows_p * hidden,                  # erf per hidden activation
        bytes_accessed=(2 * rows * dim * itemsize         # x in + out
                        + n_row_tiles * 2 * dim * hidden * 2   # W1+W2 per row tile
                        + (3 * dim + hidden) * 4),        # gamma/beta/b2 + b1
    )

    scratch_shapes = [pltpu.VMEM((row_tile, dim), jnp.bfloat16)]   # LN output (MXU lhs)
    if not acc_in_out:
        scratch_shapes.append(pltpu.VMEM((row_tile, dim), jnp.float32))

    out2d = pl.pallas_call(
        functools.partial(_ffn_kernel, acc_in_out=acc_in_out),
        out_shape=jax.ShapeDtypeStruct((rows, dim), x.dtype),
        grid_spec=pltpu.PrefetchScalarGridSpec(
            num_scalar_prefetch=0,
            grid=grid,
            in_specs=[
                pl.BlockSpec((row_tile, dim), lambda i, j: (i, 0)),      # x rows
                pl.BlockSpec((1, dim), lambda i, j: (0, 0)),             # gamma
                pl.BlockSpec((1, dim), lambda i, j: (0, 0)),             # beta
                pl.BlockSpec((dim, hidden_tile), lambda i, j: (0, j)),   # W1 tile
                pl.BlockSpec((1, hidden_tile), lambda i, j: (0, j)),     # b1 tile
                pl.BlockSpec((hidden_tile, dim), lambda i, j: (j, 0)),   # W2 tile
                pl.BlockSpec((1, dim), lambda i, j: (0, 0)),             # b2
            ],
            out_specs=pl.BlockSpec((row_tile, dim), lambda i, j: (i, 0)),
            scratch_shapes=scratch_shapes,
        ),
        compiler_params=pltpu.CompilerParams(
            dimension_semantics=("parallel", "arbitrary"),
            vmem_limit_bytes=vmem_limit,
        ),
        cost_estimate=cost,
    )(x2d, g2d, beta2d, w1_bf, b1_2d, w2_bf, b2_2d)

    return out2d.reshape(batch, seq, dim)


def ffn_ref(x, gamma, beta, w1, b1, w2, b2):
    xf = x.astype(jnp.float32)
    mean = jnp.mean(xf, axis=-1, keepdims=True)
    var = jnp.mean((xf - mean) ** 2, axis=-1, keepdims=True)
    xn = (xf - mean) * lax.rsqrt(var + LN_EPS) * gamma + beta
    h = xn @ w1 + b1
    h = 0.5 * h * (1.0 + lax.erf(h * _INV_SQRT2))
    return (h @ w2 + b2).astype(x.dtype)


if __name__ == "__main__":
    # Lane-dense demo shapes (dim multiple of 128).  The first call forces a
    # (2 row tiles x 2 hidden tiles) grid to exercise both the parallel axis and the
    # resident-output accumulation; the second uses the per-chip auto tiling.
    batch, seq, dim, n_hidden = 2, 128, 128, 256

    key = jax.random.PRNGKey(0)
    kx, kw1, kb1, kw2, kb2 = jax.random.split(key, 5)

    x = jax.random.normal(kx, (batch, seq, dim), dtype=jnp.float32)

    gamma = jnp.ones((dim,), jnp.float32)            # LayerNorm weight
    beta = jnp.zeros((dim,), jnp.float32)            # LayerNorm bias
    bound1 = 1.0 / jnp.sqrt(dim).astype(jnp.float32)
    w1 = jax.random.uniform(kw1, (dim, n_hidden), jnp.float32, -bound1, bound1)
    b1 = jax.random.uniform(kb1, (n_hidden,), jnp.float32, -bound1, bound1)
    bound2 = 1.0 / jnp.sqrt(n_hidden).astype(jnp.float32)
    w2 = jax.random.uniform(kw2, (n_hidden, dim), jnp.float32, -bound2, bound2)
    b2 = jax.random.uniform(kb2, (dim,), jnp.float32, -bound2, bound2)

    ref = ffn_ref(x, gamma, beta, w1, b1, w2, b2)

    # Explicit small tiles: grid (2, 2).
    out_tiled = ffn_pallas(x, gamma, beta, w1, b1, w2, b2,
                           row_tile=128, hidden_tile=128)
    out_tiled = jax.block_until_ready(out_tiled)
    assert out_tiled.shape == (batch, seq, dim)
    # bf16 matmul operands (f32 accumulate) vs exact f32 reference -> loose tol.
    assert jnp.allclose(out_tiled, ref, atol=2e-2, rtol=2e-2), float(
        jnp.max(jnp.abs(out_tiled - ref)))

    # Auto per-chip tiling (single tile at these small shapes).
    out_auto = ffn_pallas(x, gamma, beta, w1, b1, w2, b2)
    out_auto = jax.block_until_ready(out_auto)
    assert jnp.allclose(out_auto, ref, atol=2e-2, rtol=2e-2), float(
        jnp.max(jnp.abs(out_auto - ref)))

    print("KERNEL_OK")
</pallas_src>

<mosaic_0001>
module attributes {stable_mosaic.version = 11 : i64} {
  func.func @_ffn_kernel(%arg0: i32, %arg1: i32, %arg2: memref<128x128xf32, #tpu.memory_space<vmem>>, %arg3: memref<1x128xf32, #tpu.memory_space<vmem>>, %arg4: memref<1x128xf32, #tpu.memory_space<vmem>>, %arg5: memref<128x128xbf16, #tpu.memory_space<vmem>>, %arg6: memref<1x128xf32, #tpu.memory_space<vmem>>, %arg7: memref<128x128xbf16, #tpu.memory_space<vmem>>, %arg8: memref<1x128xf32, #tpu.memory_space<vmem>>, %arg9: memref<128x128xf32, #tpu.memory_space<vmem>>, %arg10: memref<128x128xbf16, #tpu.memory_space<vmem>>) attributes {dimension_semantics = [#tpu.dimension_semantics<parallel>, #tpu.dimension_semantics<arbitrary>], iteration_bounds = array<i64: 2, 2>, scalar_prefetch = 0 : i64, scratch_operands = 1 : i64, tpu.core_type = #tpu.core_type<tc>, window_params = [{transform_indices = @transform_0, window_bounds = array<i64: 128, 128>}, {pipeline_mode = #tpu.pipeline_mode<synchronous>, transform_indices = @transform_1, window_bounds = array<i64: 1, 128>}, {pipeline_mode = #tpu.pipeline_mode<synchronous>, transform_indices = @transform_2, window_bounds = array<i64: 1, 128>}, {transform_indices = @transform_3, window_bounds = array<i64: 128, 128>}, {transform_indices = @transform_4, window_bounds = array<i64: 1, 128>}, {transform_indices = @transform_5, window_bounds = array<i64: 128, 128>}, {pipeline_mode = #tpu.pipeline_mode<synchronous>, transform_indices = @transform_6, window_bounds = array<i64: 1, 128>}, {transform_indices = @transform_7, window_bounds = array<i64: 128, 128>}]} {
    %c0_i32 = arith.constant 0 : i32
    %0 = arith.cmpi eq, %arg1, %c0_i32 : i32
    %1 = arith.extui %0 : i1 to i32
    %c0_i32_0 = arith.constant 0 : i32
    %2 = arith.cmpi ne, %1, %c0_i32_0 : i32
    scf.if %2 {
      %c0_17 = arith.constant 0 : index
      %c0_18 = arith.constant 0 : index
      %26 = vector.load %arg2[%c0_17, %c0_18] : memref<128x128xf32, #tpu.memory_space<vmem>>, vector<128x128xf32>
      %cst_19 = arith.constant dense<0.000000e+00> : vector<128xf32>
      %27 = vector.multi_reduction <add>, %26, %cst_19 [1] : vector<128x128xf32> to vector<128xf32>
      %28 = vector.shape_cast %27 : vector<128xf32> to vector<128x1xf32>
      %cst_20 = arith.constant 1.280000e+02 : f32
      %29 = vector.broadcast %cst_20 : f32 to vector<128x1xf32>
      %30 = arith.divf %28, %29 : vector<128x1xf32>
      %31 = vector.broadcast %30 : vector<128x1xf32> to vector<128x128xf32>
      %32 = arith.subf %26, %31 : vector<128x128xf32>
      %33 = arith.mulf %32, %32 : vector<128x128xf32>
      %cst_21 = arith.constant dense<0.000000e+00> : vector<128xf32>
      %34 = vector.multi_reduction <add>, %33, %cst_21 [1] : vector<128x128xf32> to vector<128xf32>
      %35 = vector.shape_cast %34 : vector<128xf32> to vector<128x1xf32>
      %cst_22 = arith.constant 1.280000e+02 : f32
      %36 = vector.broadcast %cst_22 : f32 to vector<128x1xf32>
      %37 = arith.divf %35, %36 : vector<128x1xf32>
      %38 = vector.broadcast %30 : vector<128x1xf32> to vector<128x128xf32>
      %39 = arith.subf %26, %38 : vector<128x128xf32>
      %cst_23 = arith.constant 9.99999974E-6 : f32
      %40 = vector.broadcast %cst_23 : f32 to vector<128x1xf32>
      %41 = arith.addf %37, %40 : vector<128x1xf32>
      %42 = math.rsqrt %41 : vector<128x1xf32>
      %43 = vector.broadcast %42 : vector<128x1xf32> to vector<128x128xf32>
      %44 = arith.mulf %39, %43 : vector<128x128xf32>
      %c0_24 = arith.constant 0 : index
      %c0_25 = arith.constant 0 : index
      %45 = vector.load %arg3[%c0_24, %c0_25] : memref<1x128xf32, #tpu.memory_space<vmem>>, vector<1x128xf32>
      %46 = vector.broadcast %45 : vector<1x128xf32> to vector<128x128xf32>
      %47 = arith.mulf %44, %46 : vector<128x128xf32>
      %c0_26 = arith.constant 0 : index
      %c0_27 = arith.constant 0 : index
      %48 = vector.load %arg4[%c0_26, %c0_27] : memref<1x128xf32, #tpu.memory_space<vmem>>, vector<1x128xf32>
      %49 = vector.broadcast %48 : vector<1x128xf32> to vector<128x128xf32>
      %50 = arith.addf %47, %49 : vector<128x128xf32>
      %51 = arith.truncf %50 : vector<128x128xf32> to vector<128x128xbf16>
      %c0_28 = arith.constant 0 : index
      %c0_29 = arith.constant 0 : index
      %52 = vector.load %arg10[%c0_28, %c0_29] : memref<128x128xbf16, #tpu.memory_space<vmem>>, vector<128x128xbf16>
      tpu.vector_store %arg10[%c0_28, %c0_29], %51 {strides = array<i32>} : memref<128x128xbf16, #tpu.memory_space<vmem>>, vector<128x128xbf16>,
      %cst_30 = arith.constant 0.000000e+00 : f32
      %53 = vector.broadcast %cst_30 : f32 to vector<128x128xf32>
      %c0_31 = arith.constant 0 : index
      %c0_32 = arith.constant 0 : index
      %54 = vector.load %arg9[%c0_31, %c0_32] : memref<128x128xf32, #tpu.memory_space<vmem>>, vector<128x128xf32>
      tpu.vector_store %arg9[%c0_31, %c0_32], %53 {strides = array<i32>} : memref<128x128xf32, #tpu.memory_space<vmem>>, vector<128x128xf32>,
    } else {
    }
    %c0 = arith.constant 0 : index
    %c0_1 = arith.constant 0 : index
    %3 = vector.load %arg10[%c0, %c0_1] : memref<128x128xbf16, #tpu.memory_space<vmem>>, vector<128x128xbf16>
    %c0_2 = arith.constant 0 : index
    %c0_3 = arith.constant 0 : index
    %4 = vector.load %arg5[%c0_2, %c0_3] : memref<128x128xbf16, #tpu.memory_space<vmem>>, vector<128x128xbf16>
    %cst = arith.constant dense<0.000000e+00> : vector<128x128xf32>
    %5 = tpu.matmul %3, %4, %cst {dimension_numbers = #tpu.dot_dimension_numbers<[1], [0], [0], [1], [0, 0, 1, 1], [], []>} : vector<128x128xbf16>, vector<128x128xbf16>, vector<128x128xf32> -> vector<128x128xf32>
    %c0_4 = arith.constant 0 : index
    %c0_5 = arith.constant 0 : index
    %6 = vector.load %arg6[%c0_4, %c0_5] : memref<1x128xf32, #tpu.memory_space<vmem>>, vector<1x128xf32>
    %7 = vector.broadcast %6 : vector<1x128xf32> to vector<128x128xf32>
    %8 = arith.addf %5, %7 : vector<128x128xf32>
    %cst_6 = arith.constant 5.000000e-01 : f32
    %9 = vector.broadcast %cst_6 : f32 to vector<128x128xf32>
    %10 = arith.mulf %9, %8 : vector<128x128xf32>
    %cst_7 = arith.constant 0.707106769 : f32
    %11 = vector.broadcast %cst_7 : f32 to vector<128x128xf32>
    %12 = arith.mulf %8, %11 : vector<128x128xf32>
    %13 = math.erf %12 : vector<128x128xf32>
    %cst_8 = arith.constant 1.000000e+00 : f32
    %14 = vector.broadcast %cst_8 : f32 to vector<128x128xf32>
    %15 = arith.addf %14, %13 : vector<128x128xf32>
    %16 = arith.mulf %10, %15 : vector<128x128xf32>
    %c0_9 = arith.constant 0 : index
    %c0_10 = arith.constant 0 : index
    %17 = vector.load %arg9[%c0_9, %c0_10] : memref<128x128xf32, #tpu.memory_space<vmem>>, vector<128x128xf32>
    %18 = arith.truncf %16 : vector<128x128xf32> to vector<128x128xbf16>
    %c0_11 = arith.constant 0 : index
    %c0_12 = arith.constant 0 : index
    %19 = vector.load %arg7[%c0_11, %c0_12] : memref<128x128xbf16, #tpu.memory_space<vmem>>, vector<128x128xbf16>
    %cst_13 = arith.constant dense<0.000000e+00> : vector<128x128xf32>
    %20 = tpu.matmul %18, %19, %cst_13 {dimension_numbers = #tpu.dot_dimension_numbers<[1], [0], [0], [1], [0, 0, 1, 1], [], []>} : vector<128x128xbf16>, vector<128x128xbf16>, vector<128x128xf32> -> vector<128x128xf32>
    %21 = arith.addf %17, %20 : vector<128x128xf32>
    %c0_14 = arith.constant 0 : index
    %c0_15 = arith.constant 0 : index
    %22 = vector.load %arg9[%c0_14, %c0_15] : memref<128x128xf32, #tpu.memory_space<vmem>>, vector<128x128xf32>
    tpu.vector_store %arg9[%c0_14, %c0_15], %21 {strides = array<i32>} : memref<128x128xf32, #tpu.memory_space<vmem>>, vector<128x128xf32>,
    %c1_i32 = arith.constant 1 : i32
    %23 = arith.cmpi eq, %arg1, %c1_i32 : i32
    %24 = arith.extui %23 : i1 to i32
    %c0_i32_16 = arith.constant 0 : i32
    %25 = arith.cmpi ne, %24, %c0_i32_16 : i32
    scf.if %25 {
      %c0_17 = arith.constant 0 : index
      %c0_18 = arith.constant 0 : index
      %26 = vector.load %arg9[%c0_17, %c0_18] : memref<128x128xf32, #tpu.memory_space<vmem>>, vector<128x128xf32>
      %c0_19 = arith.constant 0 : index
      %c0_20 = arith.constant 0 : index
      %27 = vector.load %arg8[%c0_19, %c0_20] : memref<1x128xf32, #tpu.memory_space<vmem>>, vector<1x128xf32>
      %28 = vector.broadcast %27 : vector<1x128xf32> to vector<128x128xf32>
      %29 = arith.addf %26, %28 : vector<128x128xf32>
      %c0_21 = arith.constant 0 : index
      %c0_22 = arith.constant 0 : index
      %30 = vector.load %arg9[%c0_21, %c0_22] : memref<128x128xf32, #tpu.memory_space<vmem>>, vector<128x128xf32>
      tpu.vector_store %arg9[%c0_21, %c0_22], %29 {strides = array<i32>} : memref<128x128xf32, #tpu.memory_space<vmem>>, vector<128x128xf32>,
    } else {
    }
    return
  }
  func.func @transform_0(%arg0: i32, %arg1: i32) -> (i32, i32) {
    %c0_i32 = arith.constant 0 : i32
    %c0_i32_0 = arith.constant 0 : i32
    return %arg0, %c0_i32 : i32, i32
  }
  func.func @transform_1(%arg0: i32, %arg1: i32) -> (i32, i32) {
    %c0_i32 = arith.constant 0 : i32
    %c0_i32_0 = arith.constant 0 : i32
    %c0_i32_1 = arith.constant 0 : i32
    return %c0_i32, %c0_i32_0 : i32, i32
  }
  func.func @transform_2(%arg0: i32, %arg1: i32) -> (i32, i32) {
    %c0_i32 = arith.constant 0 : i32
    %c0_i32_0 = arith.constant 0 : i32
    %c0_i32_1 = arith.constant 0 : i32
    return %c0_i32, %c0_i32_0 : i32, i32
  }
  func.func @transform_3(%arg0: i32, %arg1: i32) -> (i32, i32) {
    %c0_i32 = arith.constant 0 : i32
    %c0_i32_0 = arith.constant 0 : i32
    return %c0_i32, %arg1 : i32, i32
  }
  func.func @transform_4(%arg0: i32, %arg1: i32) -> (i32, i32) {
    %c0_i32 = arith.constant 0 : i32
    %c0_i32_0 = arith.constant 0 : i32
    return %c0_i32, %arg1 : i32, i32
  }
  func.func @transform_5(%arg0: i32, %arg1: i32) -> (i32, i32) {
    %c0_i32 = arith.constant 0 : i32
    %c0_i32_0 = arith.constant 0 : i32
    return %arg1, %c0_i32 : i32, i32
  }
  func.func @transform_6(%arg0: i32, %arg1: i32) -> (i32, i32) {
    %c0_i32 = arith.constant 0 : i32
    %c0_i32_0 = arith.constant 0 : i32
    %c0_i32_1 = arith.constant 0 : i32
    return %c0_i32, %c0_i32_0 : i32, i32
  }
  func.func @transform_7(%arg0: i32, %arg1: i32) -> (i32, i32) {
    %c0_i32 = arith.constant 0 : i32
    %c0_i32_0 = arith.constant 0 : i32
    return %arg0, %c0_i32 : i32, i32
  }
}

</mosaic_0001>

<llo_original>
// kernel: ffn_pallas.1
$region0: #{ffn_pallas.1}
  #allocation0 [shape = 'u32[]', space=smem, size = 0x4, offset = 0x4, fixed_abs, tag = 'smem constant byte address 0x4 - core index']
  #allocation1 [shape = 'u32[72,128]{1,0:T(1,128)}', space=vmem, size = 0x9000, scoped, tag = 'internal scratch']
  #allocation2 [shape = 'bf16[128,128]{1,0:T(8,128)(2,1)}', space=vmem, size = 0x8000, scoped, tag = 'scratch operand']
  %s0 = inlined_call_operand.vmem [shape: f32[256,128], index: 0, kind: input, shape index: {}]
  %s1 = inlined_call_operand.vmem [shape: f32[1,128], index: 1, kind: input, shape index: {}]
  %s2 = inlined_call_operand.vmem [shape: f32[1,128], index: 2, kind: input, shape index: {}]
  %s3 = inlined_call_operand.vmem [shape: bf16[128,256], index: 3, kind: input, shape index: {}]
  %s4 = inlined_call_operand.vmem [shape: f32[1,256], index: 4, kind: input, shape index: {}]
  %s5 = inlined_call_operand.vmem [shape: bf16[256,128], index: 5, kind: input, shape index: {}]
  %s6 = inlined_call_operand.vmem [shape: f32[1,128], index: 6, kind: input, shape index: {}]
  %s7 = inlined_call_operand.hbm [shape: f32[256,128], index: 7, kind: output, shape index: {}]
  %s8 = sld [smem:[#allocation0]]
  $region110: #{ffn_pallas.1} parent=0
    _
  %s10 = ssub.s32 1, %s8
  %s11 = scalar_select 0, %s10, %s8
  $region1: #{ffn_pallas.1} parent=0
    #allocation3 [shape = 'u8[65536]{0}', space=vmem, size = 0x10000, scoped, tag = 'input window, operand 3']
    #allocation4 [shape = 'u8[131072]{0}', space=vmem, size = 0x20000, scoped, tag = 'output window, operand 0']
    #allocation5 [shape = 's32[2]{0}', space=sflag, size = 0x8, scoped, tag = 'scoped memory for ffn_pallas.1']
    %12 = vsyncpa [#allocation5], 0
    %s13 = scalar_lea.sflag [#allocation5], 1
    %14 = vsyncpa %s13, 0
    loop: start=0, step=1, limit=6
    $region2: #{ffn_pallas.1} parent=1 // loop_pre_header
      _
    $region3: #{ffn_pallas.1} parent=1 // loop_header
      %s16 = sphi 0, %s20
      %p17 = scmp.ge.s32.totalorder %s16, 6
      %s23 = sphi 0, %s35
      %s24 = sphi 0, %s31
      %s25 = sphi 0, %s23
      %s26 = sphi 0, %s24
      %s27 = sphi 0, %s25
      %s28 = sphi 0, %s26
      %s38 = sphi 0, %s40
      %s41 = sphi 0, %s38
      %s42 = sphi 0, %s41
      %s58 = sphi 0, %s42
      %s62 = sphi 0, %s62
      %s64 = sphi 0, %s62
      %s65 = sphi 0, %s64
      %s79 = sphi 0, %s65
      %s83 = sphi 0, %s83
      %s85 = sphi 0, %s83
      %s86 = sphi 0, %s85
      %s100 = sphi 0, %s86
      %s106 = sphi 0, %s108
      %s109 = sphi 0, %s106
      %s110 = sphi 0, %s109
      %s126 = sphi 0, %s110
      %s132 = sphi 0, %s134
      %s135 = sphi 0, %s132
      %s136 = sphi 0, %s135
      %s152 = sphi 0, %s136
      %s158 = sphi 0, %s160
      %s161 = sphi 0, %s158
      %s162 = sphi 0, %s161
      %s178 = sphi 0, %s162
      %s182 = sphi 0, %s182
      %s184 = sphi 0, %s182
      %s185 = sphi 0, %s184
      %s199 = sphi 0, %s185
      %s205 = sphi 0, %s207
      %s208 = sphi 0, %s205
      %s209 = sphi 0, %s208
      %s225 = sphi 0, %s209
    $region4: #{ffn_pallas.1} parent=1 // loop_header_branch
      %19 = sbr.rel (%p17) target = $region8
    $region5: #{ffn_pallas.1} parent=1 // loop_body
      %s21 = ssub.s32 %s16, 1
      %s22 = ssub.s32 %s16, 2
      %s29 = sadd.s32 1, %s24
      %p30 = scmp.ge.s32.totalorder %s29, 2
      %s31 = scalar_select %p30, 0, %s29
      %s32 = sadd.s32 1, %s23
      %s33 = scalar_select %p30, %s32, %s23
      %p34 = scmp.ge.s32.totalorder %s33, 2
      %s35 = scalar_select %p34, 0, %s33
      %s36 = ssub.s32 %s23, %s35
      %p37 = scmp.eq.s32.totalorder %s36, 0
      %s39 = sadd.s32 %s38, 1
      %s40 = scalar_select %p37, %s38, %s39
      %p43 = pneg %p37
      %p44 = scmp.eq.s32.totalorder %s16, 3
      %p45 = por %p43, %p44
      %p46 = scmp.ne.s32.totalorder %s38, %s41
      %p47 = scmp.eq.s32.totalorder %s16, 0
      %p48 = por %p46, %p47
      %p49 = scmp.ne.s32.totalorder %s38, %s41
      %p50 = scmp.eq.s32.totalorder %s21, 3
      %p51 = por %p49, %p50
      %p52 = scmp.ne.s32.totalorder %s41, %s42
      %p53 = scmp.eq.s32.totalorder %s21, 0
      %p54 = por %p52, %p53
      %p55 = scmp.ne.s32.totalorder %s41, %s42
      %p56 = scmp.eq.s32.totalorder %s22, 3
      %p57 = por %p55, %p56
      %p59 = scmp.ne.s32.totalorder %s42, %s58
      %p60 = scmp.eq.s32.totalorder %s22, 0
      %p61 = por %p59, %p60
      %s63 = sadd.s32 %s62, 1
      %p66 = scmp.eq.s32.totalorder %s16, 3
      %p67 = scmp.ne.s32.totalorder %s62, %s64
      %p68 = scmp.eq.s32.totalorder %s16, 0
      %p69 = por %p67, %p68
      %p70 = scmp.ne.s32.totalorder %s62, %s64
      %p71 = scmp.eq.s32.totalorder %s21, 3
      %p72 = por %p70, %p71
      %p73 = scmp.ne.s32.totalorder %s64, %s65
      %p74 = scmp.eq.s32.totalorder %s21, 0
      %p75 = por %p73, %p74
      %p76 = scmp.ne.s32.totalorder %s64, %s65
      %p77 = scmp.eq.s32.totalorder %s22, 3
      %p78 = por %p76, %p77
      %p80 = scmp.ne.s32.totalorder %s65, %s79
      %p81 = scmp.eq.s32.totalorder %s22, 0
      %p82 = por %p80, %p81
      %s84 = sadd.s32 %s83, 1
      %p87 = scmp.eq.s32.totalorder %s16, 3
      %p88 = scmp.ne.s32.totalorder %s83, %s85
      %p89 = scmp.eq.s32.totalorder %s16, 0
      %p90 = por %p88, %p89
      %p91 = scmp.ne.s32.totalorder %s83, %s85
      %p92 = scmp.eq.s32.totalorder %s21, 3
      %p93 = por %p91, %p92
      %p94 = scmp.ne.s32.totalorder %s85, %s86
      %p95 = scmp.eq.s32.totalorder %s21, 0
      %p96 = por %p94, %p95
      %p97 = scmp.ne.s32.totalorder %s85, %s86
      %p98 = scmp.eq.s32.totalorder %s22, 3
      %p99 = por %p97, %p98
      %p101 = scmp.ne.s32.totalorder %s86, %s100
      %p102 = scmp.eq.s32.totalorder %s22, 0
      %p103 = por %p101, %p102
      %s104 = ssub.s32 %s24, %s31
      %p105 = scmp.eq.s32.totalorder %s104, 0
      %s107 = sadd.s32 %s106, 1
      %s108 = scalar_select %p105, %s106, %s107
      %p111 = pneg %p105
      %p112 = scmp.eq.s32.totalorder %s16, 3
      %p113 = por %p111, %p112
      %p114 = scmp.ne.s32.totalorder %s106, %s109
      %p115 = scmp.eq.s32.totalorder %s16, 0
      %p116 = por %p114, %p115
      %p117 = scmp.ne.s32.totalorder %s106, %s109
      %p118 = scmp.eq.s32.totalorder %s21, 3
      %p119 = por %p117, %p118
      %p120 = scmp.ne.s32.totalorder %s109, %s110
      %p121 = scmp.eq.s32.totalorder %s21, 0
      %p122 = por %p120, %p121
      %p123 = scmp.ne.s32.totalorder %s109, %s110
      %p124 = scmp.eq.s32.totalorder %s22, 3
      %p125 = por %p123, %p124
      %p127 = scmp.ne.s32.totalorder %s110, %s126
      %p128 = scmp.eq.s32.totalorder %s22, 0
      %p129 = por %p127, %p128
      %s130 = ssub.s32 %s24, %s31
      %p131 = scmp.eq.s32.totalorder %s130, 0
      %s133 = sadd.s32 %s132, 1
      %s134 = scalar_select %p131, %s132, %s133
      %p137 = pneg %p131
      %p138 = scmp.eq.s32.totalorder %s16, 3
      %p139 = por %p137, %p138
      %p140 = scmp.ne.s32.totalorder %s132, %s135
      %p141 = scmp.eq.s32.totalorder %s16, 0
      %p142 = por %p140, %p141
      %p143 = scmp.ne.s32.totalorder %s132, %s135
      %p144 = scmp.eq.s32.totalorder %s21, 3
      %p145 = por %p143, %p144
      %p146 = scmp.ne.s32.totalorder %s135, %s136
      %p147 = scmp.eq.s32.totalorder %s21, 0
      %p148 = por %p146, %p147
      %p149 = scmp.ne.s32.totalorder %s135, %s136
      %p150 = scmp.eq.s32.totalorder %s22, 3
      %p151 = por %p149, %p150
      %p153 = scmp.ne.s32.totalorder %s136, %s152
      %p154 = scmp.eq.s32.totalorder %s22, 0
      %p155 = por %p153, %p154
      %s156 = ssub.s32 %s24, %s31
      %p157 = scmp.eq.s32.totalorder %s156, 0
      %s159 = sadd.s32 %s158, 1
      %s160 = scalar_select %p157, %s158, %s159
      %p163 = pneg %p157
      %p164 = scmp.eq.s32.totalorder %s16, 3
      %p165 = por %p163, %p164
      %p166 = scmp.ne.s32.totalorder %s158, %s161
      %p167 = scmp.eq.s32.totalorder %s16, 0
      %p168 = por %p166, %p167
      %p169 = scmp.ne.s32.totalorder %s158, %s161
      %p170 = scmp.eq.s32.totalorder %s21, 3
      %p171 = por %p169, %p170
      %p172 = scmp.ne.s32.totalorder %s161, %s162
      %p173 = scmp.eq.s32.totalorder %s21, 0
      %p174 = por %p172, %p173
      %p175 = scmp.ne.s32.totalorder %s161, %s162
      %p176 = scmp.eq.s32.totalorder %s22, 3
      %p177 = por %p175, %p176
      %p179 = scmp.ne.s32.totalorder %s162, %s178
      %p180 = scmp.eq.s32.totalorder %s22, 0
      %p181 = por %p179, %p180
      %s183 = sadd.s32 %s182, 1
      %p186 = scmp.eq.s32.totalorder %s16, 3
      %p187 = scmp.ne.s32.totalorder %s182, %s184
      %p188 = scmp.eq.s32.totalorder %s16, 0
      %p189 = por %p187, %p188
      %p190 = scmp.ne.s32.totalorder %s182, %s184
      %p191 = scmp.eq.s32.totalorder %s21, 3
      %p192 = por %p190, %p191
      %p193 = scmp.ne.s32.totalorder %s184, %s185
      %p194 = scmp.eq.s32.totalorder %s21, 0
      %p195 = por %p193, %p194
      %p196 = scmp.ne.s32.totalorder %s184, %s185
      %p197 = scmp.eq.s32.totalorder %s22, 3
      %p198 = por %p196, %p197
      %p200 = scmp.ne.s32.totalorder %s185, %s199
      %p201 = scmp.eq.s32.totalorder %s22, 0
      %p202 = por %p200, %p201
      %s203 = ssub.s32 %s23, %s35
      %p204 = scmp.eq.s32.totalorder %s203, 0
      %s206 = sadd.s32 %s205, 1
      %s207 = scalar_select %p204, %s205, %s206
      %p210 = pneg %p204
      %p211 = scmp.eq.s32.totalorder %s16, 3
      %p212 = por %p210, %p211
      %p213 = scmp.ne.s32.totalorder %s205, %s208
      %p214 = scmp.eq.s32.totalorder %s16, 0
      %p215 = por %p213, %p214
      %p216 = scmp.ne.s32.totalorder %s205, %s208
      %p217 = scmp.eq.s32.totalorder %s21, 3
      %p218 = por %p216, %p217
      %p219 = scmp.ne.s32.totalorder %s208, %s209
      %p220 = scmp.eq.s32.totalorder %s21, 0
      %p221 = por %p219, %p220
      %p222 = scmp.ne.s32.totalorder %s208, %s209
      %p223 = scmp.eq.s32.totalorder %s22, 3
      %p224 = por %p222, %p223
      %p226 = scmp.ne.s32.totalorder %s209, %s225
      %p227 = scmp.eq.s32.totalorder %s22, 0
      %p228 = por %p226, %p227
      %p229 = scmp.le.s32.totalorder 1, %s16
      %p230 = scmp.lt.s32.totalorder %s16, 5
      %p231 = pnand %p229, %p230
      %p232 = pneg %p231
      // Predicated region
      $region9: #{ffn_pallas.1} parent=5 // pred_check
        _
      $region10: #{ffn_pallas.1} parent=5 // pred_check_branch
        %234 = sbr.rel (%p231) target = $region12
      $region11: #{ffn_pallas.1} parent=5 // pred_region
        %s235 = ssub.s32 %s16, 1
        // Predicated region
        $region13: #{ffn_pallas.1} parent=11 // pred_check
          %p236 = pneg %p75
        $region14: #{ffn_pallas.1} parent=11 // pred_check_branch
          %238 = sbr.rel (%p236) target = $region16
        $region15: #{ffn_pallas.1} parent=11 // pred_region
          _
        $region16: #{ffn_pallas.1} parent=11 // pred_fallthru
          _
        // Predicated region
        $region17: #{ffn_pallas.1} parent=11 // pred_check
          %p239 = pneg %p96
        $region18: #{ffn_pallas.1} parent=11 // pred_check_branch
          %241 = sbr.rel (%p239) target = $region20
        $region19: #{ffn_pallas.1} parent=11 // pred_region
          _
        $region20: #{ffn_pallas.1} parent=11 // pred_fallthru
          _
        // Predicated region
        $region21: #{ffn_pallas.1} parent=11 // pred_check
          %p242 = pneg %p195
        $region22: #{ffn_pallas.1} parent=11 // pred_check_branch
          %244 = sbr.rel (%p242) target = $region24
        $region23: #{ffn_pallas.1} parent=11 // pred_region
          _
        $region24: #{ffn_pallas.1} parent=11 // pred_fallthru
          _
      $region12: #{ffn_pallas.1} parent=5 // pred_fallthru
        _
      %p245 = scmp.lt.s32.totalorder %s16, 4
      // Predicated region
      $region25: #{ffn_pallas.1} parent=5 // pred_check
        %p246 = pneg %p245
      $region26: #{ffn_pallas.1} parent=5 // pred_check_branch
        %248 = sbr.rel (%p246) target = $region28
      $region27: #{ffn_pallas.1} parent=5 // pred_region
        // Predicated region
        $region29: #{ffn_pallas.1} parent=27 // pred_check
          %p249 = pneg %p48
        $region30: #{ffn_pallas.1} parent=27 // pred_check_branch
          %251 = sbr.rel (%p249) target = $region32
        $region31: #{ffn_pallas.1} parent=27 // pred_region
          %s252 = smul.u32 16, %s23
          %p253 = scmp.lt.s32.totalorder %s252, 31
          %s254 = scalar_select %p253, %s252, 31
          %s255 = smul.addr %s254, 8
          %s256 = scalar_lea.vmem %s0, %s255
          %s257 = smul.u32 16, %s23
        $region32: #{ffn_pallas.1} parent=27 // pred_fallthru
          _
        // Predicated region
        $region33: #{ffn_pallas.1} parent=27 // pred_check
          %p258 = pneg %p116
        $region34: #{ffn_pallas.1} parent=27 // pred_check_branch
          %260 = sbr.rel (%p258) target = $region36
        $region35: #{ffn_pallas.1} parent=27 // pred_region
          %s261 = sand.u32 %s106, 1
          %s262 = sand.u32 %s106, 1
          %s263 = smul.addr %s262, 64
          %s264 = scalar_lea.vmem [#allocation3], %s263
          %s265 = smul.addr %s24, 4
          %s266 = scalar_lea.vmem %s3, %s265
          // Predicated region
          $region37: #{ffn_pallas.1} parent=35 // pred_check
            _
          $region38: #{ffn_pallas.1} parent=35 // pred_check_branch
            %268 = sbr.rel (0) target = $region40
          $region39: #{ffn_pallas.1} parent=35 // pred_region
            // Predicated region
            $region41: #{ffn_pallas.1} parent=39 // pred_check
              _
            $region42: #{ffn_pallas.1} parent=39 // pred_check_branch
              %270 = sbr.rel target = $region44
            $region43: #{ffn_pallas.1} parent=39 // pred_region
              // Predicated region
              $region56: #{ffn_pallas.1} parent=43 // pred_check
                _
              $region57: #{ffn_pallas.1} parent=43 // pred_check_branch
                %316 = sbr.rel (0) target = $region59
              $region58: #{ffn_pallas.1} parent=43 // pred_region
                loop: start=0, step=1, limit=1
                $region60: #{ffn_pallas.1} parent=58 // loop_pre_header
                  _
                $region61: #{ffn_pallas.1} parent=58 // loop_header
                  %s318 = sphi 0, %s322
                  %p319 = scmp.ge.s32.totalorder %s318, 1
                  %s323 = sphi %s266, %s266
                  %s324 = sphi %s264, %s264
                $region62: #{ffn_pallas.1} parent=58 // loop_header_branch
                  %321 = sbr.rel (%p319) target = $region66
                $region63: #{ffn_pallas.1} parent=58 // loop_body
                  _
                $region64: #{ffn_pallas.1} parent=58 // loop_footer
                  %s322 = sadd.s32 1, %s318
                $region65: #{ffn_pallas.1} parent=58 // loop_footer_branch
                  %317 = sbr.rel target = $region61
                $region66: #{ffn_pallas.1} parent=58 // loop_exit
                  _
                %s326 = ssub.s32 16, 1
                loop: start=0, step=1, limit=1
                $region67: #{ffn_pallas.1} parent=58 // loop_pre_header
                  _
                $region68: #{ffn_pallas.1} parent=58 // loop_header
                  %s328 = sphi 0, %s332
                  %p329 = scmp.ge.s32.totalorder %s328, 1
                  %s333 = sphi %s266, %s266
                  %s334 = sphi %s264, %s264
                $region69: #{ffn_pallas.1} parent=58 // loop_header_branch
                  %331 = sbr.rel (%p329) target = $region73
                $region70: #{ffn_pallas.1} parent=58 // loop_body
                  %v335 = vld [vmem:[%s333] sm:%s326]
                  %336 = vst [vmem:[%s334] sm:%s326] %v335
                  %v337 = vld [vmem:[%s333 + $0x8] sm:%s326]
                  %338 = vst [vmem:[%s334 + $0x4] sm:%s326] %v337
                  %v339 = vld [vmem:[%s333 + $0x10] sm:%s326]
                  %340 = vst [vmem:[%s334 + $0x8] sm:%s326] %v339
                  %v341 = vld [vmem:[%s333 + $0x18] sm:%s326]
                  %342 = vst [vmem:[%s334 + $0xc] sm:%s326] %v341
                  %v343 = vld [vmem:[%s333 + $0x20] sm:%s326]
                  %344 = vst [vmem:[%s334 + $0x10] sm:%s326] %v343
                  %v345 = vld [vmem:[%s333 + $0x28] sm:%s326]
                  %346 = vst [vmem:[%s334 + $0x14] sm:%s326] %v345
                  %v347 = vld [vmem:[%s333 + $0x30] sm:%s326]
                  %348 = vst [vmem:[%s334 + $0x18] sm:%s326] %v347
                  %v349 = vld [vmem:[%s333 + $0x38] sm:%s326]
                  %350 = vst [vmem:[%s334 + $0x1c] sm:%s326] %v349
                  %v351 = vld [vmem:[%s333 + $0x40] sm:%s326]
                  %352 = vst [vmem:[%s334 + $0x20] sm:%s326] %v351
                  %v353 = vld [vmem:[%s333 + $0x48] sm:%s326]
                  %354 = vst [vmem:[%s334 + $0x24] sm:%s326] %v353
                  %v355 = vld [vmem:[%s333 + $0x50] sm:%s326]
                  %356 = vst [vmem:[%s334 + $0x28] sm:%s326] %v355
                  %v357 = vld [vmem:[%s333 + $0x58] sm:%s326]
                  %358 = vst [vmem:[%s334 + $0x2c] sm:%s326] %v357
                  %v359 = vld [vmem:[%s333 + $0x60] sm:%s326]
                  %360 = vst [vmem:[%s334 + $0x30] sm:%s326] %v359
                  %v361 = vld [vmem:[%s333 + $0x68] sm:%s326]
                  %362 = vst [vmem:[%s334 + $0x34] sm:%s326] %v361
                  %v363 = vld [vmem:[%s333 + $0x70] sm:%s326]
                  %364 = vst [vmem:[%s334 + $0x38] sm:%s326] %v363
                  %v365 = vld [vmem:[%s333 + $0x78] sm:%s326]
                  %366 = vst [vmem:[%s334 + $0x3c] sm:%s326] %v365
                $region71: #{ffn_pallas.1} parent=58 // loop_footer
                  %s332 = sadd.s32 1, %s328
                $region72: #{ffn_pallas.1} parent=58 // loop_footer_branch
                  %327 = sbr.rel target = $region68
                $region73: #{ffn_pallas.1} parent=58 // loop_exit
                  _
              $region59: #{ffn_pallas.1} parent=43 // pred_fallthru
                _
            $region44: #{ffn_pallas.1} parent=39 // pred_fallthru
              _
            // Predicated region
            $region45: #{ffn_pallas.1} parent=39 // pred_check
              _
            $region46: #{ffn_pallas.1} parent=39 // pred_check_branch
              %272 = sbr.rel (0) target = $region48
            $region47: #{ffn_pallas.1} parent=39 // pred_region
              %s274 = ssub.s32 16, 1
              loop: start=0, step=1, limit=1
              $region49: #{ffn_pallas.1} parent=47 // loop_pre_header
                _
              $region50: #{ffn_pallas.1} parent=47 // loop_header
                %s276 = sphi 0, %s280
                %p277 = scmp.ge.s32.totalorder %s276, 1
                %s281 = sphi %s266, %s266
                %s282 = sphi %s264, %s264
              $region51: #{ffn_pallas.1} parent=47 // loop_header_branch
                %279 = sbr.rel (%p277) target = $region55
              $region52: #{ffn_pallas.1} parent=47 // loop_body
                %v283 = vld [vmem:[%s281] sm:%s274]
                %284 = vst [vmem:[%s282] sm:%s274] %v283
                %v285 = vld [vmem:[%s281 + $0x8] sm:%s274]
                %286 = vst [vmem:[%s282 + $0x4] sm:%s274] %v285
                %v287 = vld [vmem:[%s281 + $0x10] sm:%s274]
                %288 = vst [vmem:[%s282 + $0x8] sm:%s274] %v287
                %v289 = vld [vmem:[%s281 + $0x18] sm:%s274]
                %290 = vst [vmem:[%s282 + $0xc] sm:%s274] %v289
                %v291 = vld [vmem:[%s281 + $0x20] sm:%s274]
                %292 = vst [vmem:[%s282 + $0x10] sm:%s274] %v291
                %v293 = vld [vmem:[%s281 + $0x28] sm:%s274]
                %294 = vst [vmem:[%s282 + $0x14] sm:%s274] %v293
                %v295 = vld [vmem:[%s281 + $0x30] sm:%s274]
                %296 = vst [vmem:[%s282 + $0x18] sm:%s274] %v295
                %v297 = vld [vmem:[%s281 + $0x38] sm:%s274]
                %298 = vst [vmem:[%s282 + $0x1c] sm:%s274] %v297
                %v299 = vld [vmem:[%s281 + $0x40] sm:%s274]
                %300 = vst [vmem:[%s282 + $0x20] sm:%s274] %v299
                %v301 = vld [vmem:[%s281 + $0x48] sm:%s274]
                %302 = vst [vmem:[%s282 + $0x24] sm:%s274] %v301
                %v303 = vld [vmem:[%s281 + $0x50] sm:%s274]
                %304 = vst [vmem:[%s282 + $0x28] sm:%s274] %v303
                %v305 = vld [vmem:[%s281 + $0x58] sm:%s274]
                %306 = vst [vmem:[%s282 + $0x2c] sm:%s274] %v305
                %v307 = vld [vmem:[%s281 + $0x60] sm:%s274]
                %308 = vst [vmem:[%s282 + $0x30] sm:%s274] %v307
                %v309 = vld [vmem:[%s281 + $0x68] sm:%s274]
                %310 = vst [vmem:[%s282 + $0x34] sm:%s274] %v309
                %v311 = vld [vmem:[%s281 + $0x70] sm:%s274]
                %312 = vst [vmem:[%s282 + $0x38] sm:%s274] %v311
                %v313 = vld [vmem:[%s281 + $0x78] sm:%s274]
                %314 = vst [vmem:[%s282 + $0x3c] sm:%s274] %v313
              $region53: #{ffn_pallas.1} parent=47 // loop_footer
                %s280 = sadd.s32 1, %s276
              $region54: #{ffn_pallas.1} parent=47 // loop_footer_branch
                %275 = sbr.rel target = $region50
              $region55: #{ffn_pallas.1} parent=47 // loop_exit
                _
            $region48: #{ffn_pallas.1} parent=39 // pred_fallthru
              _
          $region40: #{ffn_pallas.1} parent=35 // pred_fallthru
            _
          %367 = vnop
        $region36: #{ffn_pallas.1} parent=27 // pred_fallthru
          _
        // Predicated region
        $region74: #{ffn_pallas.1} parent=27 // pred_check
          %p368 = pneg %p142
        $region75: #{ffn_pallas.1} parent=27 // pred_check_branch
          %370 = sbr.rel (%p368) target = $region77
        $region76: #{ffn_pallas.1} parent=27 // pred_region
          %p371 = scmp.lt.s32.totalorder %s24, 1
          %s372 = scalar_select %p371, %s24, 1
          %s373 = scalar_lea.vmem %s4, %s372
        $region77: #{ffn_pallas.1} parent=27 // pred_fallthru
          _
        // Predicated region
        $region78: #{ffn_pallas.1} parent=27 // pred_check
          %p374 = pneg %p168
        $region79: #{ffn_pallas.1} parent=27 // pred_check_branch
          %376 = sbr.rel (%p374) target = $region81
        $region80: #{ffn_pallas.1} parent=27 // pred_region
          %s377 = smul.u32 16, %s24
          %p378 = scmp.lt.s32.totalorder %s377, 31
          %s379 = scalar_select %p378, %s377, 31
          %s380 = smul.addr %s379, 4
          %s381 = scalar_lea.vmem %s5, %s380
          %s382 = smul.u32 16, %s24
        $region81: #{ffn_pallas.1} parent=27 // pred_fallthru
          _
      $region28: #{ffn_pallas.1} parent=5 // pred_fallthru
        _
      %p383 = scmp.le.s32.totalorder 1, %s16
      %p384 = scmp.lt.s32.totalorder %s16, 5
      %p385 = pnand %p383, %p384
      %p386 = pneg %p385
      // Predicated region
      $region82: #{ffn_pallas.1} parent=5 // pred_check
        _
      $region83: #{ffn_pallas.1} parent=5 // pred_check_branch
        %388 = sbr.rel (%p385) target = $region85
      $region84: #{ffn_pallas.1} parent=5 // pred_region
        %s389 = ssub.s32 %s16, 1
        %s390 = sand.u32 %s109, 1
        %s391 = sand.u32 %s109, 1
        %s392 = smul.addr %s391, 64
        %s393 = scalar_lea.vmem [#allocation3], %s392
        // Predicated region
        $region86: #{ffn_pallas.1} parent=84 // pred_check
          %p394 = pneg %p122
        $region87: #{ffn_pallas.1} parent=84 // pred_check_branch
          %396 = sbr.rel (%p394) target = $region89
        $region88: #{ffn_pallas.1} parent=84 // pred_region
          _
        $region89: #{ffn_pallas.1} parent=84 // pred_fallthru
          _
        %s397 = smul.u32 16, %s25
        %p398 = scmp.lt.s32.totalorder %s397, 31
        %s399 = scalar_select %p398, %s397, 31
        %s400 = smul.addr %s399, 8
        %s401 = scalar_lea.vmem %s0, %s400
        %p402 = pneg %p54
        %p403 = pneg %p51
        %p404 = pneg %p75
        %p405 = pneg %p72
        %p406 = pneg %p96
        %p407 = pneg %p93
        %s408 = sand.u32 %s109, 1
        %s409 = sand.u32 %s109, 1
        %s410 = smul.addr %s409, 64
        %s411 = scalar_lea.vmem [#allocation3], %s410
        %p412 = pneg %p122
        %p413 = pneg %p119
        %p414 = scmp.lt.s32.totalorder %s26, 1
        %s415 = scalar_select %p414, %s26, 1
        %s416 = scalar_lea.vmem %s4, %s415
        %p417 = pneg %p148
        %p418 = pneg %p145
        %s419 = smul.u32 16, %s26
        %p420 = scmp.lt.s32.totalorder %s419, 31
        %s421 = scalar_select %p420, %s419, 31
        %s422 = smul.addr %s421, 4
        %s423 = scalar_lea.vmem %s5, %s422
        %p424 = pneg %p174
        %p425 = pneg %p171
        %p426 = pneg %p195
        %p427 = pneg %p192
        %p428 = pneg %p221
        %p429 = pneg %p218
        %s430 = sand.u32 %s208, 1
        %s431 = scalar_lea.sflag [#allocation5], %s430
        %s432 = sand.u32 %s208, 1
        %s433 = smul.addr %s432, 128
        %s434 = scalar_lea.vmem [#allocation4], %s433
        %s435 = smul.u32 16, %s25
        %p436 = scmp.lt.s32.totalorder %s435, 31
        %s437 = scalar_select %p436, %s435, 31
        %s438 = smul.addr %s437, 8
        %s439 = scalar_lea.vmem %s0, %s438
        %s440 = smul.u32 16, %s25
        %p441 = scmp.lt.s32.totalorder %s26, 1
        %s442 = scalar_select %p441, %s26, 1
        %s443 = scalar_lea.vmem %s4, %s442
        %s444 = smul.u32 16, %s26
        %p445 = scmp.lt.s32.totalorder %s444, 31
        %s446 = scalar_select %p445, %s444, 31
        %s447 = smul.addr %s446, 4
        %s448 = scalar_lea.vmem %s5, %s447
        %s449 = smul.u32 16, %s26
        %s450 = smul.u32 16, %s25
        %p451 = scmp.eq.s32.totalorder %s26, 0
        // Predicated region
        $region90: #{ffn_pallas.1} parent=84 // pred_check
          %p452 = pneg %p451
        $region91: #{ffn_pallas.1} parent=84 // pred_check_branch
          %454 = sbr.rel (%p452) target = $region93
        $region92: #{ffn_pallas.1} parent=84 // pred_region
          %v455 = vld [vmem:[%s439] sm:$0xff]
          %v456 = vld [vmem:[%s439 + $0x8] sm:$0xff]
          %v457 = vld [vmem:[%s439 + $0x10] sm:$0xff]
          %v458 = vld [vmem:[%s439 + $0x18] sm:$0xff]
          %v459 = vld [vmem:[%s439 + $0x20] sm:$0xff]
          %v460 = vld [vmem:[%s439 + $0x28] sm:$0xff]
          %v461 = vld [vmem:[%s439 + $0x30] sm:$0xff]
          %v462 = vld [vmem:[%s439 + $0x38] sm:$0xff]
          %v463 = vld [vmem:[%s439 + $0x40] sm:$0xff]
          %v464 = vld [vmem:[%s439 + $0x48] sm:$0xff]
          %v465 = vld [vmem:[%s439 + $0x50] sm:$0xff]
          %v466 = vld [vmem:[%s439 + $0x58] sm:$0xff]
          %v467 = vld [vmem:[%s439 + $0x60] sm:$0xff]
          %v468 = vld [vmem:[%s439 + $0x68] sm:$0xff]
          %v469 = vld [vmem:[%s439 + $0x70] sm:$0xff]
          %v470 = vld [vmem:[%s439 + $0x78] sm:$0xff]
          %471 = vadd.xlane.f32.xlu0 %v455
          %v472 = vpop.xlane.xlu0 %471
          %473 = vadd.xlane.f32.xlu0 %v456
          %v474 = vpop.xlane.xlu0 %473
          %475 = vadd.xlane.f32.xlu0 %v457
          %v476 = vpop.xlane.xlu0 %475
          %477 = vadd.xlane.f32.xlu0 %v458
          %v478 = vpop.xlane.xlu0 %477
          %479 = vadd.xlane.f32.xlu0 %v459
          %v480 = vpop.xlane.xlu0 %479
          %481 = vadd.xlane.f32.xlu0 %v460
          %v482 = vpop.xlane.xlu0 %481
          %483 = vadd.xlane.f32.xlu0 %v461
          %v484 = vpop.xlane.xlu0 %483
          %485 = vadd.xlane.f32.xlu0 %v462
          %v486 = vpop.xlane.xlu0 %485
          %487 = vadd.xlane.f32.xlu0 %v463
          %v488 = vpop.xlane.xlu0 %487
          %489 = vadd.xlane.f32.xlu0 %v464
          %v490 = vpop.xlane.xlu0 %489
          %491 = vadd.xlane.f32.xlu0 %v465
          %v492 = vpop.xlane.xlu0 %491
          %493 = vadd.xlane.f32.xlu0 %v466
          %v494 = vpop.xlane.xlu0 %493
          %495 = vadd.xlane.f32.xlu0 %v467
          %v496 = vpop.xlane.xlu0 %495
          %497 = vadd.xlane.f32.xlu0 %v468
          %v498 = vpop.xlane.xlu0 %497
          %499 = vadd.xlane.f32.xlu0 %v469
          %v500 = vpop.xlane.xlu0 %499
          %501 = vadd.xlane.f32.xlu0 %v470
          %v502 = vpop.xlane.xlu0 %501
          %v503 = vrcp.pop 128.0
          %v504 = vmul.f32 128.0, %v503
          %v505 = vsub.f32 1.0, %v504
          %v506 = vmul.f32 %v503, %v505
          %v507 = vadd.f32 %v503, %v506
          %vm508 = vweird.f32 %v503
          %v509 = vsel %vm508, %v503, %v507
          %v510 = vmul.f32 %v472, %v509
          %v511 = vmul.f32 %v474, %v509
          %v512 = vmul.f32 %v476, %v509
          %v513 = vmul.f32 %v478, %v509
          %v514 = vmul.f32 %v480, %v509
          %v515 = vmul.f32 %v482, %v509
          %v516 = vmul.f32 %v484, %v509
          %v517 = vmul.f32 %v486, %v509
          %v518 = vmul.f32 %v488, %v509
          %v519 = vmul.f32 %v490, %v509
          %v520 = vmul.f32 %v492, %v509
          %v521 = vmul.f32 %v494, %v509
          %v522 = vmul.f32 %v496, %v509
          %v523 = vmul.f32 %v498, %v509
          %v524 = vmul.f32 %v500, %v509
          %v525 = vmul.f32 %v502, %v509
          %v526 = vsub.f32 %v455, %v510
          %v527 = vsub.f32 %v456, %v511
          %v528 = vsub.f32 %v457, %v512
          %v529 = vsub.f32 %v458, %v513
          %v530 = vsub.f32 %v459, %v514
          %v531 = vsub.f32 %v460, %v515
          %v532 = vsub.f32 %v461, %v516
          %v533 = vsub.f32 %v462, %v517
          %v534 = vsub.f32 %v463, %v518
          %v535 = vsub.f32 %v464, %v519
          %v536 = vsub.f32 %v465, %v520
          %v537 = vsub.f32 %v466, %v521
          %v538 = vsub.f32 %v467, %v522
          %v539 = vsub.f32 %v468, %v523
          %v540 = vsub.f32 %v469, %v524
          %v541 = vsub.f32 %v470, %v525
          %v542 = vmul.f32 %v526, %v526
          %v543 = vmul.f32 %v527, %v527
          %v544 = vmul.f32 %v528, %v528
          %v545 = vmul.f32 %v529, %v529
          %v546 = vmul.f32 %v530, %v530
          %v547 = vmul.f32 %v531, %v531
          %v548 = vmul.f32 %v532, %v532
          %v549 = vmul.f32 %v533, %v533
          %v550 = vmul.f32 %v534, %v534
          %v551 = vmul.f32 %v535, %v535
          %v552 = vmul.f32 %v536, %v536
          %v553 = vmul.f32 %v537, %v537
          %v554 = vmul.f32 %v538, %v538
          %v555 = vmul.f32 %v539, %v539
          %v556 = vmul.f32 %v540, %v540
          %v557 = vmul.f32 %v541, %v541
          %558 = vadd.xlane.f32.xlu0 %v542
          %v559 = vpop.xlane.xlu0 %558
          %560 = vadd.xlane.f32.xlu0 %v543
          %v561 = vpop.xlane.xlu0 %560
          %562 = vadd.xlane.f32.xlu0 %v544
          %v563 = vpop.xlane.xlu0 %562
          %564 = vadd.xlane.f32.xlu0 %v545
          %v565 = vpop.xlane.xlu0 %564
          %566 = vadd.xlane.f32.xlu0 %v546
          %v567 = vpop.xlane.xlu0 %566
          %568 = vadd.xlane.f32.xlu0 %v547
          %v569 = vpop.xlane.xlu0 %568
          %570 = vadd.xlane.f32.xlu0 %v548
          %v571 = vpop.xlane.xlu0 %570
          %572 = vadd.xlane.f32.xlu0 %v549
          %v573 = vpop.xlane.xlu0 %572
          %574 = vadd.xlane.f32.xlu0 %v550
          %v575 = vpop.xlane.xlu0 %574
          %576 = vadd.xlane.f32.xlu0 %v551
          %v577 = vpop.xlane.xlu0 %576
          %578 = vadd.xlane.f32.xlu0 %v552
          %v579 = vpop.xlane.xlu0 %578
          %580 = vadd.xlane.f32.xlu0 %v553
          %v581 = vpop.xlane.xlu0 %580
          %582 = vadd.xlane.f32.xlu0 %v554
          %v583 = vpop.xlane.xlu0 %582
          %584 = vadd.xlane.f32.xlu0 %v555
          %v585 = vpop.xlane.xlu0 %584
          %586 = vadd.xlane.f32.xlu0 %v556
          %v587 = vpop.xlane.xlu0 %586
          %588 = vadd.xlane.f32.xlu0 %v557
          %v589 = vpop.xlane.xlu0 %588
          %v590 = vmul.f32 %v559, %v509
          %v591 = vmul.f32 %v561, %v509
          %v592 = vmul.f32 %v563, %v509
          %v593 = vmul.f32 %v565, %v509
          %v594 = vmul.f32 %v567, %v509
          %v595 = vmul.f32 %v569, %v509
          %v596 = vmul.f32 %v571, %v509
          %v597 = vmul.f32 %v573, %v509
          %v598 = vmul.f32 %v575, %v509
          %v599 = vmul.f32 %v577, %v509
          %v600 = vmul.f32 %v579, %v509
          %v601 = vmul.f32 %v581, %v509
          %v602 = vmul.f32 %v583, %v509
          %v603 = vmul.f32 %v585, %v509
          %v604 = vmul.f32 %v587, %v509
          %v605 = vmul.f32 %v589, %v509
          %v606 = vadd.f32 %v590, 1e-05
          %v607 = vadd.f32 %v591, 1e-05
          %v608 = vadd.f32 %v592, 1e-05
          %v609 = vadd.f32 %v593, 1e-05
          %v610 = vadd.f32 %v594, 1e-05
          %v611 = vadd.f32 %v595, 1e-05
          %v612 = vadd.f32 %v596, 1e-05
          %v613 = vadd.f32 %v597, 1e-05
          %v614 = vadd.f32 %v598, 1e-05
          %v615 = vadd.f32 %v599, 1e-05
          %v616 = vadd.f32 %v600, 1e-05
          %v617 = vadd.f32 %v601, 1e-05
          %v618 = vadd.f32 %v602, 1e-05
          %v619 = vadd.f32 %v603, 1e-05
          %v620 = vadd.f32 %v604, 1e-05
          %v621 = vadd.f32 %v605, 1e-05
          %v622 = vrsqrt.pop %v606
          %v623 = vmul.f32 %v622, %v606
          %v624 = vmul.f32 %v623, %v622
          %v625 = vmul.f32 0.5, %v624
          %v626 = vsub.f32 1.5, %v625
          %v627 = vmul.f32 %v622, %v626
          %vm628 = vweird.f32 %v606
          %vm629 = vweird.f32 %v622
          %vm630 = vmor %vm628, %vm629
          %v631 = vsel %vm630, %v622, %v627
          %v632 = vrsqrt.pop %v607
          %v633 = vmul.f32 %v632, %v607
          %v634 = vmul.f32 %v633, %v632
          %v635 = vmul.f32 0.5, %v634
          %v636 = vsub.f32 1.5, %v635
          %v637 = vmul.f32 %v632, %v636
          %vm638 = vweird.f32 %v607
          %vm639 = vweird.f32 %v632
          %vm640 = vmor %vm638, %vm639
          %v641 = vsel %vm640, %v632, %v637
          %v642 = vrsqrt.pop %v608
          %v643 = vmul.f32 %v642, %v608
          %v644 = vmul.f32 %v643, %v642
          %v645 = vmul.f32 0.5, %v644
          %v646 = vsub.f32 1.5, %v645
          %v647 = vmul.f32 %v642, %v646
          %vm648 = vweird.f32 %v608
          %vm649 = vweird.f32 %v642
          %vm650 = vmor %vm648, %vm649
          %v651 = vsel %vm650, %v642, %v647
          %v652 = vrsqrt.pop %v609
          %v653 = vmul.f32 %v652, %v609
          %v654 = vmul.f32 %v653, %v652
          %v655 = vmul.f32 0.5, %v654
          %v656 = vsub.f32 1.5, %v655
          %v657 = vmul.f32 %v652, %v656
          %vm658 = vweird.f32 %v609
          %vm659 = vweird.f32 %v652
          %vm660 = vmor %vm658, %vm659
          %v661 = vsel %vm660, %v652, %v657
          %v662 = vrsqrt.pop %v610
          %v663 = vmul.f32 %v662, %v610
          %v664 = vmul.f32 %v663, %v662
          %v665 = vmul.f32 0.5, %v664
          %v666 = vsub.f32 1.5, %v665
          %v667 = vmul.f32 %v662, %v666
          %vm668 = vweird.f32 %v610
          %vm669 = vweird.f32 %v662
          %vm670 = vmor %vm668, %vm669
          %v671 = vsel %vm670, %v662, %v667
          %v672 = vrsqrt.pop %v611
          %v673 = vmul.f32 %v672, %v611
          %v674 = vmul.f32 %v673, %v672
          %v675 = vmul.f32 0.5, %v674
          %v676 = vsub.f32 1.5, %v675
          %v677 = vmul.f32 %v672, %v676
          %vm678 = vweird.f32 %v611
          %vm679 = vweird.f32 %v672
          %vm680 = vmor %vm678, %vm679
          %v681 = vsel %vm680, %v672, %v677
          %v682 = vrsqrt.pop %v612
          %v683 = vmul.f32 %v682, %v612
          %v684 = vmul.f32 %v683, %v682
          %v685 = vmul.f32 0.5, %v684
          %v686 = vsub.f32 1.5, %v685
          %v687 = vmul.f32 %v682, %v686
          %vm688 = vweird.f32 %v612
          %vm689 = vweird.f32 %v682
          %vm690 = vmor %vm688, %vm689
          %v691 = vsel %vm690, %v682, %v687
          %v692 = vrsqrt.pop %v613
          %v693 = vmul.f32 %v692, %v613
          %v694 = vmul.f32 %v693, %v692
          %v695 = vmul.f32 0.5, %v694
          %v696 = vsub.f32 1.5, %v695
          %v697 = vmul.f32 %v692, %v696
          %vm698 = vweird.f32 %v613
          %vm699 = vweird.f32 %v692
          %vm700 = vmor %vm698, %vm699
          %v701 = vsel %vm700, %v692, %v697
          %v702 = vrsqrt.pop %v614
          %v703 = vmul.f32 %v702, %v614
          %v704 = vmul.f32 %v703, %v702
          %v705 = vmul.f32 0.5, %v704
          %v706 = vsub.f32 1.5, %v705
          %v707 = vmul.f32 %v702, %v706
          %vm708 = vweird.f32 %v614
          %vm709 = vweird.f32 %v702
          %vm710 = vmor %vm708, %vm709
          %v711 = vsel %vm710, %v702, %v707
          %v712 = vrsqrt.pop %v615
          %v713 = vmul.f32 %v712, %v615
          %v714 = vmul.f32 %v713, %v712
          %v715 = vmul.f32 0.5, %v714
          %v716 = vsub.f32 1.5, %v715
          %v717 = vmul.f32 %v712, %v716
          %vm718 = vweird.f32 %v615
          %vm719 = vweird.f32 %v712
          %vm720 = vmor %vm718, %vm719
          %v721 = vsel %vm720, %v712, %v717
          %v722 = vrsqrt.pop %v616
          %v723 = vmul.f32 %v722, %v616
          %v724 = vmul.f32 %v723, %v722
          %v725 = vmul.f32 0.5, %v724
          %v726 = vsub.f32 1.5, %v725
          %v727 = vmul.f32 %v722, %v726
          %vm728 = vweird.f32 %v616
          %vm729 = vweird.f32 %v722
          %vm730 = vmor %vm728, %vm729
          %v731 = vsel %vm730, %v722, %v727
          %v732 = vrsqrt.pop %v617
          %v733 = vmul.f32 %v732, %v617
          %v734 = vmul.f32 %v733, %v732
          %v735 = vmul.f32 0.5, %v734
          %v736 = vsub.f32 1.5, %v735
          %v737 = vmul.f32 %v732, %v736
          %vm738 = vweird.f32 %v617
          %vm739 = vweird.f32 %v732
          %vm740 = vmor %vm738, %vm739
          %v741 = vsel %vm740, %v732, %v737
          %v742 = vrsqrt.pop %v618
          %v743 = vmul.f32 %v742, %v618
          %v744 = vmul.f32 %v743, %v742
          %v745 = vmul.f32 0.5, %v744
          %v746 = vsub.f32 1.5, %v745
          %v747 = vmul.f32 %v742, %v746
          %vm748 = vweird.f32 %v618
          %vm749 = vweird.f32 %v742
          %vm750 = vmor %vm748, %vm749
          %v751 = vsel %vm750, %v742, %v747
          %v752 = vrsqrt.pop %v619
          %v753 = vmul.f32 %v752, %v619
          %v754 = vmul.f32 %v753, %v752
          %v755 = vmul.f32 0.5, %v754
          %v756 = vsub.f32 1.5, %v755
          %v757 = vmul.f32 %v752, %v756
          %vm758 = vweird.f32 %v619
          %vm759 = vweird.f32 %v752
          %vm760 = vmor %vm758, %vm759
          %v761 = vsel %vm760, %v752, %v757
          %v762 = vrsqrt.pop %v620
          %v763 = vmul.f32 %v762, %v620
          %v764 = vmul.f32 %v763, %v762
          %v765 = vmul.f32 0.5, %v764
          %v766 = vsub.f32 1.5, %v765
          %v767 = vmul.f32 %v762, %v766
          %vm768 = vweird.f32 %v620
          %vm769 = vweird.f32 %v762
          %vm770 = vmor %vm768, %vm769
          %v771 = vsel %vm770, %v762, %v767
          %v772 = vrsqrt.pop %v621
          %v773 = vmul.f32 %v772, %v621
          %v774 = vmul.f32 %v773, %v772
          %v775 = vmul.f32 0.5, %v774
          %v776 = vsub.f32 1.5, %v775
          %v777 = vmul.f32 %v772, %v776
          %vm778 = vweird.f32 %v621
          %vm779 = vweird.f32 %v772
          %vm780 = vmor %vm778, %vm779
          %v781 = vsel %vm780, %v772, %v777
          %v782 = vmul.f32 %v526, %v631
          %v783 = vmul.f32 %v527, %v641
          %v784 = vmul.f32 %v528, %v651
          %v785 = vmul.f32 %v529, %v661
          %v786 = vmul.f32 %v530, %v671
          %v787 = vmul.f32 %v531, %v681
          %v788 = vmul.f32 %v532, %v691
          %v789 = vmul.f32 %v533, %v701
          %v790 = vmul.f32 %v534, %v711
          %v791 = vmul.f32 %v535, %v721
          %v792 = vmul.f32 %v536, %v731
          %v793 = vmul.f32 %v537, %v741
          %v794 = vmul.f32 %v538, %v751
          %v795 = vmul.f32 %v539, %v761
          %v796 = vmul.f32 %v540, %v771
          %v797 = vmul.f32 %v541, %v781
          %v798 = vld [vmem:[%s1] sm:$0x1]
          %v800 = vperm.slane %v798, 0
          %v802 = vmul.f32 %v782, %v800
          %v803 = vmul.f32 %v783, %v800
          %v804 = vmul.f32 %v784, %v800
          %v805 = vmul.f32 %v785, %v800
          %v806 = vmul.f32 %v786, %v800
          %v807 = vmul.f32 %v787, %v800
          %v808 = vmul.f32 %v788, %v800
          %v809 = vmul.f32 %v789, %v800
          %v810 = vmul.f32 %v790, %v800
          %v811 = vmul.f32 %v791, %v800
          %v812 = vmul.f32 %v792, %v800
          %v813 = vmul.f32 %v793, %v800
          %v814 = vmul.f32 %v794, %v800
          %v815 = vmul.f32 %v795, %v800
          %v816 = vmul.f32 %v796, %v800
          %v817 = vmul.f32 %v797, %v800
          %v818 = vld [vmem:[%s2] sm:$0x1]
          %v820 = vperm.slane %v818, 0
          %v822 = vadd.f32 %v802, %v820
          %v823 = vadd.f32 %v803, %v820
          %v824 = vadd.f32 %v804, %v820
          %v825 = vadd.f32 %v805, %v820
          %v826 = vadd.f32 %v806, %v820
          %v827 = vadd.f32 %v807, %v820
          %v828 = vadd.f32 %v808, %v820
          %v829 = vadd.f32 %v809, %v820
          %v830 = vadd.f32 %v810, %v820
          %v831 = vadd.f32 %v811, %v820
          %v832 = vadd.f32 %v812, %v820
          %v833 = vadd.f32 %v813, %v820
          %v834 = vadd.f32 %v814, %v820
          %v835 = vadd.f32 %v815, %v820
          %v836 = vadd.f32 %v816, %v820
          %v837 = vadd.f32 %v817, %v820
          %v838 = vpack.c.bf16 %v822, %v822
          %v839 = vpack.c.bf16 %v823, %v823
          %v840 = vpack.c.bf16 %v824, %v824
          %v841 = vpack.c.bf16 %v825, %v825
          %v842 = vpack.c.bf16 %v826, %v826
          %v843 = vpack.c.bf16 %v827, %v827
          %v844 = vpack.c.bf16 %v828, %v828
          %v845 = vpack.c.bf16 %v829, %v829
          %v846 = vpack.c.bf16 %v830, %v830
          %v847 = vpack.c.bf16 %v831, %v831
          %v848 = vpack.c.bf16 %v832, %v832
          %v849 = vpack.c.bf16 %v833, %v833
          %v850 = vpack.c.bf16 %v834, %v834
          %v851 = vpack.c.bf16 %v835, %v835
          %v852 = vpack.c.bf16 %v836, %v836
          %v853 = vpack.c.bf16 %v837, %v837
          %854 = vst [vmem:[#allocation2] sm:$0xf] %v838
          %855 = vst [vmem:[#allocation2 + $0x4] sm:$0xf] %v839
          %856 = vst [vmem:[#allocation2 + $0x8] sm:$0xf] %v840
          %857 = vst [vmem:[#allocation2 + $0xc] sm:$0xf] %v841
          %858 = vst [vmem:[#allocation2 + $0x10] sm:$0xf] %v842
          %859 = vst [vmem:[#allocation2 + $0x14] sm:$0xf] %v843
          %860 = vst [vmem:[#allocation2 + $0x18] sm:$0xf] %v844
          %861 = vst [vmem:[#allocation2 + $0x1c] sm:$0xf] %v845
          %862 = vst [vmem:[#allocation2 + $0x20] sm:$0xf] %v846
          %863 = vst [vmem:[#allocation2 + $0x24] sm:$0xf] %v847
          %864 = vst [vmem:[#allocation2 + $0x28] sm:$0xf] %v848
          %865 = vst [vmem:[#allocation2 + $0x2c] sm:$0xf] %v849
          %866 = vst [vmem:[#allocation2 + $0x30] sm:$0xf] %v850
          %867 = vst [vmem:[#allocation2 + $0x34] sm:$0xf] %v851
          %868 = vst [vmem:[#allocation2 + $0x38] sm:$0xf] %v852
          %869 = vst [vmem:[#allocation2 + $0x3c] sm:$0xf] %v853
          %870 = vst [vmem:[%s434] sm:$0xff] 0.0
          %871 = vst [vmem:[%s434 + $0x8] sm:$0xff] 0.0
          %872 = vst [vmem:[%s434 + $0x10] sm:$0xff] 0.0
          %873 = vst [vmem:[%s434 + $0x18] sm:$0xff] 0.0
          %874 = vst [vmem:[%s434 + $0x20] sm:$0xff] 0.0
          %875 = vst [vmem:[%s434 + $0x28] sm:$0xff] 0.0
          %876 = vst [vmem:[%s434 + $0x30] sm:$0xff] 0.0
          %877 = vst [vmem:[%s434 + $0x38] sm:$0xff] 0.0
          %878 = vst [vmem:[%s434 + $0x40] sm:$0xff] 0.0
          %879 = vst [vmem:[%s434 + $0x48] sm:$0xff] 0.0
          %880 = vst [vmem:[%s434 + $0x50] sm:$0xff] 0.0
          %881 = vst [vmem:[%s434 + $0x58] sm:$0xff] 0.0
          %882 = vst [vmem:[%s434 + $0x60] sm:$0xff] 0.0
          %883 = vst [vmem:[%s434 + $0x68] sm:$0xff] 0.0
          %884 = vst [vmem:[%s434 + $0x70] sm:$0xff] 0.0
          %885 = vst [vmem:[%s434 + $0x78] sm:$0xff] 0.0
        $region93: #{ffn_pallas.1} parent=84 // pred_fallthru
          _
        %v886 = vld [vmem:[#allocation2] sm:$0xf]
        %v887 = vld [vmem:[#allocation2 + $0x4] sm:$0xf]
        %v888 = vld [vmem:[#allocation2 + $0x8] sm:$0xf]
        %v889 = vld [vmem:[#allocation2 + $0xc] sm:$0xf]
        %v890 = vld [vmem:[#allocation2 + $0x10] sm:$0xf]
        %v891 = vld [vmem:[#allocation2 + $0x14] sm:$0xf]
        %v892 = vld [vmem:[#allocation2 + $0x18] sm:$0xf]
        %v893 = vld [vmem:[#allocation2 + $0x1c] sm:$0xf]
        %v894 = vld [vmem:[#allocation2 + $0x20] sm:$0xf]
        %v895 = vld [vmem:[#allocation2 + $0x24] sm:$0xf]
        %v896 = vld [vmem:[#allocation2 + $0x28] sm:$0xf]
        %v897 = vld [vmem:[#allocation2 + $0x2c] sm:$0xf]
        %v898 = vld [vmem:[#allocation2 + $0x30] sm:$0xf]
        %v899 = vld [vmem:[#allocation2 + $0x34] sm:$0xf]
        %v900 = vld [vmem:[#allocation2 + $0x38] sm:$0xf]
        %v901 = vld [vmem:[#allocation2 + $0x3c] sm:$0xf]
        %v902 = vld [vmem:[%s393] sm:$0xf]
        %v903 = vld [vmem:[%s393 + $0x4] sm:$0xf]
        %v904 = vld [vmem:[%s393 + $0x8] sm:$0xf]
        %v905 = vld [vmem:[%s393 + $0xc] sm:$0xf]
        %v906 = vld [vmem:[%s393 + $0x10] sm:$0xf]
        %v907 = vld [vmem:[%s393 + $0x14] sm:$0xf]
        %v908 = vld [vmem:[%s393 + $0x18] sm:$0xf]
        %v909 = vld [vmem:[%s393 + $0x1c] sm:$0xf]
        %v910 = vld [vmem:[%s393 + $0x20] sm:$0xf]
        %v911 = vld [vmem:[%s393 + $0x24] sm:$0xf]
        %v912 = vld [vmem:[%s393 + $0x28] sm:$0xf]
        %v913 = vld [vmem:[%s393 + $0x2c] sm:$0xf]
        %v914 = vld [vmem:[%s393 + $0x30] sm:$0xf]
        %v915 = vld [vmem:[%s393 + $0x34] sm:$0xf]
        %v916 = vld [vmem:[%s393 + $0x38] sm:$0xf]
        %v917 = vld [vmem:[%s393 + $0x3c] sm:$0xf]
        %v918 = vld [vmem:[%s443] sm:$0x1]
        %v920 = vperm.slane %v918, 0
        %v938 = vunpack.c.l.b16 %v886
        %v939 = vunpack.c.l.b16 %v887
        %v940 = vunpack.c.l.b16 %v888
        %v941 = vunpack.c.l.b16 %v889
        %v942 = vunpack.c.l.b16 %v890
        %v943 = vunpack.c.l.b16 %v891
        %v944 = vunpack.c.l.b16 %v892
        %v945 = vunpack.c.l.b16 %v893
        %v946 = vunpack.c.l.b16 %v894
        %v947 = vunpack.c.l.b16 %v895
        %v948 = vunpack.c.l.b16 %v896
        %v949 = vunpack.c.l.b16 %v897
        %v950 = vunpack.c.l.b16 %v898
        %v951 = vunpack.c.l.b16 %v899
        %v952 = vunpack.c.l.b16 %v900
        %v953 = vunpack.c.l.b16 %v901
        %v954 = vpack.c.b16 %v939, %v938
        %v955 = vpack.c.b16 %v941, %v940
        %v956 = vpack.c.b16 %v943, %v942
        %v957 = vpack.c.b16 %v945, %v944
        %v958 = vpack.c.b16 %v947, %v946
        %v959 = vpack.c.b16 %v949, %v948
        %v960 = vpack.c.b16 %v951, %v950
        %v961 = vpack.c.b16 %v953, %v952
        %v986 = vunpack.c.l.b16 %v902
        %v987 = vunpack.c.l.b16 %v903
        %v988 = vunpack.c.l.b16 %v904
        %v989 = vunpack.c.l.b16 %v905
        %v990 = vunpack.c.l.b16 %v906
        %v991 = vunpack.c.l.b16 %v907
        %v992 = vunpack.c.l.b16 %v908
        %v993 = vunpack.c.l.b16 %v909
        %v994 = vunpack.c.l.b16 %v910
        %v995 = vunpack.c.l.b16 %v911
        %v996 = vunpack.c.l.b16 %v912
        %v997 = vunpack.c.l.b16 %v913
        %v998 = vunpack.c.l.b16 %v914
        %v999 = vunpack.c.l.b16 %v915
        %v1000 = vunpack.c.l.b16 %v916
        %v1001 = vunpack.c.l.b16 %v917
        %v1002 = vpack.c.b16 %v987, %v986
        %v1003 = vpack.c.b16 %v989, %v988
        %v1004 = vpack.c.b16 %v991, %v990
        %v1005 = vpack.c.b16 %v993, %v992
        %v1006 = vpack.c.b16 %v995, %v994
        %v1007 = vpack.c.b16 %v997, %v996
        %v1008 = vpack.c.b16 %v999, %v998
        %v1009 = vpack.c.b16 %v1001, %v1000
        %1018 = vmatpush.bf16.msra.mxu0 %v1009
        %1019 = vmatpush.bf16.msra.mxu0 %v1008
        %1020 = vmatpush.bf16.msra.mxu0 %v1007
        %1021 = vmatpush.bf16.msra.mxu0 %v1006
        %1022 = vmatpush.bf16.msra.mxu0 %v1005
        %1023 = vmatpush.bf16.msra.mxu0 %v1004
        %1024 = vmatpush.bf16.msra.mxu0 %v1003
        %1025 = vmatpush.bf16.msra.mxu0 %v1002
        %1026 = vmatmul.bf16.gmra.mxu0 %v954
        %v1027 = vpop.f32.mrf.mxu0
        %v1028 = vadd.f32 %v920, %v1027
        %v1029 = vpop.f32.mrf.mxu0
        %v1030 = vadd.f32 %v920, %v1029
        %1031 = vmatmul.bf16.gmra.mxu0 %v955
        %v1032 = vpop.f32.mrf.mxu0
        %v1033 = vadd.f32 %v920, %v1032
        %v1034 = vpop.f32.mrf.mxu0
        %v1035 = vadd.f32 %v920, %v1034
        %1036 = vmatmul.bf16.gmra.mxu0 %v956
        %v1037 = vpop.f32.mrf.mxu0
        %v1038 = vadd.f32 %v920, %v1037
        %v1039 = vpop.f32.mrf.mxu0
        %v1040 = vadd.f32 %v920, %v1039
        %1041 = vmatmul.bf16.gmra.mxu0 %v957
        %v1042 = vpop.f32.mrf.mxu0
        %v1043 = vadd.f32 %v920, %v1042
        %v1044 = vpop.f32.mrf.mxu0
        %v1045 = vadd.f32 %v920, %v1044
        %1046 = vmatmul.bf16.gmra.mxu0 %v958
        %v1047 = vpop.f32.mrf.mxu0
        %v1048 = vadd.f32 %v920, %v1047
        %v1049 = vpop.f32.mrf.mxu0
        %v1050 = vadd.f32 %v920, %v1049
        %1051 = vmatmul.bf16.gmra.mxu0 %v959
        %v1052 = vpop.f32.mrf.mxu0
        %v1053 = vadd.f32 %v920, %v1052
        %v1054 = vpop.f32.mrf.mxu0
        %v1055 = vadd.f32 %v920, %v1054
        %1056 = vmatmul.bf16.gmra.mxu0 %v960
        %v1057 = vpop.f32.mrf.mxu0
        %v1058 = vadd.f32 %v920, %v1057
        %v1059 = vpop.f32.mrf.mxu0
        %v1060 = vadd.f32 %v920, %v1059
        %1061 = vmatmul.bf16.gmra.mxu0 %v961
        %v1062 = vpop.f32.mrf.mxu0
        %v1063 = vadd.f32 %v920, %v1062
        %v1064 = vpop.f32.mrf.mxu0
        %v1065 = vadd.f32 %v920, %v1064
        %1066 = vdwg.mxu0
        %v1067 = vmul.f32 %v1028, 0.5
        %v1068 = vmul.f32 %v1030, 0.5
        %v1069 = vmul.f32 %v1033, 0.5
        %v1070 = vmul.f32 %v1035, 0.5
        %v1071 = vmul.f32 %v1038, 0.5
        %v1072 = vmul.f32 %v1040, 0.5
        %v1073 = vmul.f32 %v1043, 0.5
        %v1074 = vmul.f32 %v1045, 0.5
        %v1075 = vmul.f32 %v1048, 0.5
        %v1076 = vmul.f32 %v1050, 0.5
        %v1077 = vmul.f32 %v1053, 0.5
        %v1078 = vmul.f32 %v1055, 0.5
        %v1079 = vmul.f32 %v1058, 0.5
        %v1080 = vmul.f32 %v1060, 0.5
        %v1081 = vmul.f32 %v1063, 0.5
        %v1082 = vmul.f32 %v1065, 0.5
        %v1083 = vmul.f32 %v1028, 0.70710677
        %v1084 = vmul.f32 %v1030, 0.70710677
        %v1085 = vmul.f32 %v1033, 0.70710677
        %v1086 = vmul.f32 %v1035, 0.70710677
        %v1087 = vmul.f32 %v1038, 0.70710677
        %v1088 = vmul.f32 %v1040, 0.70710677
        %v1089 = vmul.f32 %v1043, 0.70710677
        %v1090 = vmul.f32 %v1045, 0.70710677
        %v1091 = vmul.f32 %v1048, 0.70710677
        %v1092 = vmul.f32 %v1050, 0.70710677
        %v1093 = vmul.f32 %v1053, 0.70710677
        %v1094 = vmul.f32 %v1055, 0.70710677
        %v1095 = vmul.f32 %v1058, 0.70710677
        %v1096 = vmul.f32 %v1060, 0.70710677
        %v1097 = vmul.f32 %v1063, 0.70710677
        %v1098 = vmul.f32 %v1065, 0.70710677
        %v1099 = vmul.f32 %v1083, %v1083
        %v1100 = vmin.f32 16.0, %v1099
        %v1101 = vmul.f32 %v1100, 2.1237322e-06
        %v1102 = vadd.f32 %v1101, 0.00028619796
        %v1103 = vmul.f32 %v1100, %v1102
        %v1104 = vadd.f32 %v1103, 0.0036580483
        %v1105 = vmul.f32 %v1100, %v1104
        %v1106 = vadd.f32 %v1105, 0.05243302
        %v1107 = vmul.f32 %v1100, %v1106
        %v1108 = vadd.f32 %v1107, 0.18741608
        %v1109 = vmul.f32 %v1100, %v1108
        %v1110 = vadd.f32 %v1109, 1.1283791
        %v1111 = vmul.f32 %v1083, %v1110
        %v1112 = vmul.f32 %v1100, 3.8918573e-05
        %v1113 = vadd.f32 %v1112, 0.001143296
        %v1114 = vmul.f32 %v1100, %v1113
        %v1115 = vadd.f32 %v1114, 0.014752088
        %v1116 = vmul.f32 %v1100, %v1115
        %v1117 = vadd.f32 %v1116, 0.112945676
        %v1118 = vmul.f32 %v1100, %v1117
        %v1119 = vadd.f32 %v1118, 0.4994258
        %v1120 = vmul.f32 %v1100, %v1119
        %v1121 = vadd.f32 %v1120, 1.0
        %v1122 = vrcp.pop %v1121
        %v1123 = vmul.f32 %v1121, %v1122
        %v1124 = vsub.f32 1.0, %v1123
        %v1125 = vmul.f32 %v1122, %v1124
        %v1126 = vadd.f32 %v1122, %v1125
        %vm1127 = vweird.f32 %v1121
        %vm1128 = vweird.f32 %v1122
        %vm1129 = vmor %vm1127, %vm1128
        %v1130 = vsel %vm1129, %v1122, %v1126
        %v1131 = vand.u32 2147483647, %v1121
        %vm1132 = vcmp.eq.f32.partialorder %v1131, 8.507059e+37
        %v1133 = vand.u32 %v1121, 2147483648
        %v1134 = vor.u32 1.1754944e-38, %v1133
        %v1135 = vsel %vm1132, %v1134, %v1130
        %v1136 = vmul.f32 %v1111, %v1135
        %v1137 = vmin.f32 %v1136, 1.0
        %v1138 = vmax.f32 %v1137, -1.0
        %v1139 = vmul.f32 %v1084, %v1084
        %v1140 = vmin.f32 16.0, %v1139
        %v1141 = vmul.f32 %v1140, 2.1237322e-06
        %v1142 = vadd.f32 %v1141, 0.00028619796
        %v1143 = vmul.f32 %v1140, %v1142
        %v1144 = vadd.f32 %v1143, 0.0036580483
        %v1145 = vmul.f32 %v1140, %v1144
        %v1146 = vadd.f32 %v1145, 0.05243302
        %v1147 = vmul.f32 %v1140, %v1146
        %v1148 = vadd.f32 %v1147, 0.18741608
        %v1149 = vmul.f32 %v1140, %v1148
        %v1150 = vadd.f32 %v1149, 1.1283791
        %v1151 = vmul.f32 %v1084, %v1150
        %v1152 = vmul.f32 %v1140, 3.8918573e-05
        %v1153 = vadd.f32 %v1152, 0.001143296
        %v1154 = vmul.f32 %v1140, %v1153
        %v1155 = vadd.f32 %v1154, 0.014752088
        %v1156 = vmul.f32 %v1140, %v1155
        %v1157 = vadd.f32 %v1156, 0.112945676
        %v1158 = vmul.f32 %v1140, %v1157
        %v1159 = vadd.f32 %v1158, 0.4994258
        %v1160 = vmul.f32 %v1140, %v1159
        %v1161 = vadd.f32 %v1160, 1.0
        %v1162 = vrcp.pop %v1161
        %v1163 = vmul.f32 %v1161, %v1162
        %v1164 = vsub.f32 1.0, %v1163
        %v1165 = vmul.f32 %v1162, %v1164
        %v1166 = vadd.f32 %v1162, %v1165
        %vm1167 = vweird.f32 %v1161
        %vm1168 = vweird.f32 %v1162
        %vm1169 = vmor %vm1167, %vm1168
        %v1170 = vsel %vm1169, %v1162, %v1166
        %v1171 = vand.u32 2147483647, %v1161
        %vm1172 = vcmp.eq.f32.partialorder %v1171, 8.507059e+37
        %v1173 = vand.u32 %v1161, 2147483648
        %v1174 = vor.u32 1.1754944e-38, %v1173
        %v1175 = vsel %vm1172, %v1174, %v1170
        %v1176 = vmul.f32 %v1151, %v1175
        %v1177 = vmin.f32 %v1176, 1.0
        %v1178 = vmax.f32 %v1177, -1.0
        %v1179 = vmul.f32 %v1085, %v1085
        %v1180 = vmin.f32 16.0, %v1179
        %v1181 = vmul.f32 %v1180, 2.1237322e-06
        %v1182 = vadd.f32 %v1181, 0.00028619796
        %v1183 = vmul.f32 %v1180, %v1182
        %v1184 = vadd.f32 %v1183, 0.0036580483
        %v1185 = vmul.f32 %v1180, %v1184
        %v1186 = vadd.f32 %v1185, 0.05243302
        %v1187 = vmul.f32 %v1180, %v1186
        %v1188 = vadd.f32 %v1187, 0.18741608
        %v1189 = vmul.f32 %v1180, %v1188
        %v1190 = vadd.f32 %v1189, 1.1283791
        %v1191 = vmul.f32 %v1085, %v1190
        %v1192 = vmul.f32 %v1180, 3.8918573e-05
        %v1193 = vadd.f32 %v1192, 0.001143296
        %v1194 = vmul.f32 %v1180, %v1193
        %v1195 = vadd.f32 %v1194, 0.014752088
        %v1196 = vmul.f32 %v1180, %v1195
        %v1197 = vadd.f32 %v1196, 0.112945676
        %v1198 = vmul.f32 %v1180, %v1197
        %v1199 = vadd.f32 %v1198, 0.4994258
        %v1200 = vmul.f32 %v1180, %v1199
        %v1201 = vadd.f32 %v1200, 1.0
        %v1202 = vrcp.pop %v1201
        %v1203 = vmul.f32 %v1201, %v1202
        %v1204 = vsub.f32 1.0, %v1203
        %v1205 = vmul.f32 %v1202, %v1204
        %v1206 = vadd.f32 %v1202, %v1205
        %vm1207 = vweird.f32 %v1201
        %vm1208 = vweird.f32 %v1202
        %vm1209 = vmor %vm1207, %vm1208
        %v1210 = vsel %vm1209, %v1202, %v1206
        %v1211 = vand.u32 2147483647, %v1201
        %vm1212 = vcmp.eq.f32.partialorder %v1211, 8.507059e+37
        %v1213 = vand.u32 %v1201, 2147483648
        %v1214 = vor.u32 1.1754944e-38, %v1213
        %v1215 = vsel %vm1212, %v1214, %v1210
        %v1216 = vmul.f32 %v1191, %v1215
        %v1217 = vmin.f32 %v1216, 1.0
        %v1218 = vmax.f32 %v1217, -1.0
        %v1219 = vmul.f32 %v1086, %v1086
        %v1220 = vmin.f32 16.0, %v1219
        %v1221 = vmul.f32 %v1220, 2.1237322e-06
        %v1222 = vadd.f32 %v1221, 0.00028619796
        %v1223 = vmul.f32 %v1220, %v1222
        %v1224 = vadd.f32 %v1223, 0.0036580483
        %v1225 = vmul.f32 %v1220, %v1224
        %v1226 = vadd.f32 %v1225, 0.05243302
        %v1227 = vmul.f32 %v1220, %v1226
        %v1228 = vadd.f32 %v1227, 0.18741608
        %v1229 = vmul.f32 %v1220, %v1228
        %v1230 = vadd.f32 %v1229, 1.1283791
        %v1231 = vmul.f32 %v1086, %v1230
        %v1232 = vmul.f32 %v1220, 3.8918573e-05
        %v1233 = vadd.f32 %v1232, 0.001143296
        %v1234 = vmul.f32 %v1220, %v1233
        %v1235 = vadd.f32 %v1234, 0.014752088
        %v1236 = vmul.f32 %v1220, %v1235
        %v1237 = vadd.f32 %v1236, 0.112945676
        %v1238 = vmul.f32 %v1220, %v1237
        %v1239 = vadd.f32 %v1238, 0.4994258
        %v1240 = vmul.f32 %v1220, %v1239
        %v1241 = vadd.f32 %v1240, 1.0
        %v1242 = vrcp.pop %v1241
        %v1243 = vmul.f32 %v1241, %v1242
        %v1244 = vsub.f32 1.0, %v1243
        %v1245 = vmul.f32 %v1242, %v1244
        %v1246 = vadd.f32 %v1242, %v1245
        %vm1247 = vweird.f32 %v1241
        %vm1248 = vweird.f32 %v1242
        %vm1249 = vmor %vm1247, %vm1248
        %v1250 = vsel %vm1249, %v1242, %v1246
        %v1251 = vand.u32 2147483647, %v1241
        %vm1252 = vcmp.eq.f32.partialorder %v1251, 8.507059e+37
        %v1253 = vand.u32 %v1241, 2147483648
        %v1254 = vor.u32 1.1754944e-38, %v1253
        %v1255 = vsel %vm1252, %v1254, %v1250
        %v1256 = vmul.f32 %v1231, %v1255
        %v1257 = vmin.f32 %v1256, 1.0
        %v1258 = vmax.f32 %v1257, -1.0
        %v1259 = vmul.f32 %v1087, %v1087
        %v1260 = vmin.f32 16.0, %v1259
        %v1261 = vmul.f32 %v1260, 2.1237322e-06
        %v1262 = vadd.f32 %v1261, 0.00028619796
        %v1263 = vmul.f32 %v1260, %v1262
        %v1264 = vadd.f32 %v1263, 0.0036580483
        %v1265 = vmul.f32 %v1260, %v1264
        %v1266 = vadd.f32 %v1265, 0.05243302
        %v1267 = vmul.f32 %v1260, %v1266
        %v1268 = vadd.f32 %v1267, 0.18741608
        %v1269 = vmul.f32 %v1260, %v1268
        %v1270 = vadd.f32 %v1269, 1.1283791
        %v1271 = vmul.f32 %v1087, %v1270
        %v1272 = vmul.f32 %v1260, 3.8918573e-05
        %v1273 = vadd.f32 %v1272, 0.001143296
        %v1274 = vmul.f32 %v1260, %v1273
        %v1275 = vadd.f32 %v1274, 0.014752088
        %v1276 = vmul.f32 %v1260, %v1275
        %v1277 = vadd.f32 %v1276, 0.112945676
        %v1278 = vmul.f32 %v1260, %v1277
        %v1279 = vadd.f32 %v1278, 0.4994258
        %v1280 = vmul.f32 %v1260, %v1279
        %v1281 = vadd.f32 %v1280, 1.0
        %v1282 = vrcp.pop %v1281
        %v1283 = vmul.f32 %v1281, %v1282
        %v1284 = vsub.f32 1.0, %v1283
        %v1285 = vmul.f32 %v1282, %v1284
        %v1286 = vadd.f32 %v1282, %v1285
        %vm1287 = vweird.f32 %v1281
        %vm1288 = vweird.f32 %v1282
        %vm1289 = vmor %vm1287, %vm1288
        %v1290 = vsel %vm1289, %v1282, %v1286
        %v1291 = vand.u32 2147483647, %v1281
        %vm1292 = vcmp.eq.f32.partialorder %v1291, 8.507059e+37
        %v1293 = vand.u32 %v1281, 2147483648
        %v1294 = vor.u32 1.1754944e-38, %v1293
        %v1295 = vsel %vm1292, %v1294, %v1290
        %v1296 = vmul.f32 %v1271, %v1295
        %v1297 = vmin.f32 %v1296, 1.0
        %v1298 = vmax.f32 %v1297, -1.0
        %v1299 = vmul.f32 %v1088, %v1088
        %v1300 = vmin.f32 16.0, %v1299
        %v1301 = vmul.f32 %v1300, 2.1237322e-06
        %v1302 = vadd.f32 %v1301, 0.00028619796
        %v1303 = vmul.f32 %v1300, %v1302
        %v1304 = vadd.f32 %v1303, 0.0036580483
        %v1305 = vmul.f32 %v1300, %v1304
        %v1306 = vadd.f32 %v1305, 0.05243302
        %v1307 = vmul.f32 %v1300, %v1306
        %v1308 = vadd.f32 %v1307, 0.18741608
        %v1309 = vmul.f32 %v1300, %v1308
        %v1310 = vadd.f32 %v1309, 1.1283791
        %v1311 = vmul.f32 %v1088, %v1310
        %v1312 = vmul.f32 %v1300, 3.8918573e-05
        %v1313 = vadd.f32 %v1312, 0.001143296
        %v1314 = vmul.f32 %v1300, %v1313
        %v1315 = vadd.f32 %v1314, 0.014752088
        %v1316 = vmul.f32 %v1300, %v1315
        %v1317 = vadd.f32 %v1316, 0.112945676
        %v1318 = vmul.f32 %v1300, %v1317
        %v1319 = vadd.f32 %v1318, 0.4994258
        %v1320 = vmul.f32 %v1300, %v1319
        %v1321 = vadd.f32 %v1320, 1.0
        %v1322 = vrcp.pop %v1321
        %v1323 = vmul.f32 %v1321, %v1322
        %v1324 = vsub.f32 1.0, %v1323
        %v1325 = vmul.f32 %v1322, %v1324
        %v1326 = vadd.f32 %v1322, %v1325
        %vm1327 = vweird.f32 %v1321
        %vm1328 = vweird.f32 %v1322
        %vm1329 = vmor %vm1327, %vm1328
        %v1330 = vsel %vm1329, %v1322, %v1326
        %v1331 = vand.u32 2147483647, %v1321
        %vm1332 = vcmp.eq.f32.partialorder %v1331, 8.507059e+37
        %v1333 = vand.u32 %v1321, 2147483648
        %v1334 = vor.u32 1.1754944e-38, %v1333
        %v1335 = vsel %vm1332, %v1334, %v1330
        %v1336 = vmul.f32 %v1311, %v1335
        %v1337 = vmin.f32 %v1336, 1.0
        %v1338 = vmax.f32 %v1337, -1.0
        %v1339 = vmul.f32 %v1089, %v1089
        %v1340 = vmin.f32 16.0, %v1339
        %v1341 = vmul.f32 %v1340, 2.1237322e-06
        %v1342 = vadd.f32 %v1341, 0.00028619796
        %v1343 = vmul.f32 %v1340, %v1342
        %v1344 = vadd.f32 %v1343, 0.0036580483
        %v1345 = vmul.f32 %v1340, %v1344
        %v1346 = vadd.f32 %v1345, 0.05243302
        %v1347 = vmul.f32 %v1340, %v1346
        %v1348 = vadd.f32 %v1347, 0.18741608
        %v1349 = vmul.f32 %v1340, %v1348
        %v1350 = vadd.f32 %v1349, 1.1283791
        %v1351 = vmul.f32 %v1089, %v1350
        %v1352 = vmul.f32 %v1340, 3.8918573e-05
        %v1353 = vadd.f32 %v1352, 0.001143296
        %v1354 = vmul.f32 %v1340, %v1353
        %v1355 = vadd.f32 %v1354, 0.014752088
        %v1356 = vmul.f32 %v1340, %v1355
        %v1357 = vadd.f32 %v1356, 0.112945676
        %v1358 = vmul.f32 %v1340, %v1357
        %v1359 = vadd.f32 %v1358, 0.4994258
        %v1360 = vmul.f32 %v1340, %v1359
        %v1361 = vadd.f32 %v1360, 1.0
        %v1362 = vrcp.pop %v1361
        %v1363 = vmul.f32 %v1361, %v1362
        %v1364 = vsub.f32 1.0, %v1363
        %v1365 = vmul.f32 %v1362, %v1364
        %v1366 = vadd.f32 %v1362, %v1365
        %vm1367 = vweird.f32 %v1361
        %vm1368 = vweird.f32 %v1362
        %vm1369 = vmor %vm1367, %vm1368
        %v1370 = vsel %vm1369, %v1362, %v1366
        %v1371 = vand.u32 2147483647, %v1361
        %vm1372 = vcmp.eq.f32.partialorder %v1371, 8.507059e+37
        %v1373 = vand.u32 %v1361, 2147483648
        %v1374 = vor.u32 1.1754944e-38, %v1373
        %v1375 = vsel %vm1372, %v1374, %v1370
        %v1376 = vmul.f32 %v1351, %v1375
        %v1377 = vmin.f32 %v1376, 1.0
        %v1378 = vmax.f32 %v1377, -1.0
        %v1379 = vmul.f32 %v1090, %v1090
        %v1380 = vmin.f32 16.0, %v1379
        %v1381 = vmul.f32 %v1380, 2.1237322e-06
        %v1382 = vadd.f32 %v1381, 0.00028619796
        %v1383 = vmul.f32 %v1380, %v1382
        %v1384 = vadd.f32 %v1383, 0.0036580483
        %v1385 = vmul.f32 %v1380, %v1384
        %v1386 = vadd.f32 %v1385, 0.05243302
        %v1387 = vmul.f32 %v1380, %v1386
        %v1388 = vadd.f32 %v1387, 0.18741608
        %v1389 = vmul.f32 %v1380, %v1388
        %v1390 = vadd.f32 %v1389, 1.1283791
        %v1391 = vmul.f32 %v1090, %v1390
        %v1392 = vmul.f32 %v1380, 3.8918573e-05
        %v1393 = vadd.f32 %v1392, 0.001143296
        %v1394 = vmul.f32 %v1380, %v1393
        %v1395 = vadd.f32 %v1394, 0.014752088
        %v1396 = vmul.f32 %v1380, %v1395
        %v1397 = vadd.f32 %v1396, 0.112945676
        %v1398 = vmul.f32 %v1380, %v1397
        %v1399 = vadd.f32 %v1398, 0.4994258
        %v1400 = vmul.f32 %v1380, %v1399
        %v1401 = vadd.f32 %v1400, 1.0
        %v1402 = vrcp.pop %v1401
        %v1403 = vmul.f32 %v1401, %v1402
        %v1404 = vsub.f32 1.0, %v1403
        %v1405 = vmul.f32 %v1402, %v1404
        %v1406 = vadd.f32 %v1402, %v1405
        %vm1407 = vweird.f32 %v1401
        %vm1408 = vweird.f32 %v1402
        %vm1409 = vmor %vm1407, %vm1408
        %v1410 = vsel %vm1409, %v1402, %v1406
        %v1411 = vand.u32 2147483647, %v1401
        %vm1412 = vcmp.eq.f32.partialorder %v1411, 8.507059e+37
        %v1413 = vand.u32 %v1401, 2147483648
        %v1414 = vor.u32 1.1754944e-38, %v1413
        %v1415 = vsel %vm1412, %v1414, %v1410
        %v1416 = vmul.f32 %v1391, %v1415
        %v1417 = vmin.f32 %v1416, 1.0
        %v1418 = vmax.f32 %v1417, -1.0
        %v1419 = vmul.f32 %v1091, %v1091
        %v1420 = vmin.f32 16.0, %v1419
        %v1421 = vmul.f32 %v1420, 2.1237322e-06
        %v1422 = vadd.f32 %v1421, 0.00028619796
        %v1423 = vmul.f32 %v1420, %v1422
        %v1424 = vadd.f32 %v1423, 0.0036580483
        %v1425 = vmul.f32 %v1420, %v1424
        %v1426 = vadd.f32 %v1425, 0.05243302
        %v1427 = vmul.f32 %v1420, %v1426
        %v1428 = vadd.f32 %v1427, 0.18741608
        %v1429 = vmul.f32 %v1420, %v1428
        %v1430 = vadd.f32 %v1429, 1.1283791
        %v1431 = vmul.f32 %v1091, %v1430
        %v1432 = vmul.f32 %v1420, 3.8918573e-05
        %v1433 = vadd.f32 %v1432, 0.001143296
        %v1434 = vmul.f32 %v1420, %v1433
        %v1435 = vadd.f32 %v1434, 0.014752088
        %v1436 = vmul.f32 %v1420, %v1435
        %v1437 = vadd.f32 %v1436, 0.112945676
        %v1438 = vmul.f32 %v1420, %v1437
        %v1439 = vadd.f32 %v1438, 0.4994258
        %v1440 = vmul.f32 %v1420, %v1439
        %v1441 = vadd.f32 %v1440, 1.0
        %v1442 = vrcp.pop %v1441
        %v1443 = vmul.f32 %v1441, %v1442
        %v1444 = vsub.f32 1.0, %v1443
        %v1445 = vmul.f32 %v1442, %v1444
        %v1446 = vadd.f32 %v1442, %v1445
        %vm1447 = vweird.f32 %v1441
        %vm1448 = vweird.f32 %v1442
        %vm1449 = vmor %vm1447, %vm1448
        %v1450 = vsel %vm1449, %v1442, %v1446
        %v1451 = vand.u32 2147483647, %v1441
        %vm1452 = vcmp.eq.f32.partialorder %v1451, 8.507059e+37
        %v1453 = vand.u32 %v1441, 2147483648
        %v1454 = vor.u32 1.1754944e-38, %v1453
        %v1455 = vsel %vm1452, %v1454, %v1450
        %v1456 = vmul.f32 %v1431, %v1455
        %v1457 = vmin.f32 %v1456, 1.0
        %v1458 = vmax.f32 %v1457, -1.0
        %v1459 = vmul.f32 %v1092, %v1092
        %v1460 = vmin.f32 16.0, %v1459
        %v1461 = vmul.f32 %v1460, 2.1237322e-06
        %v1462 = vadd.f32 %v1461, 0.00028619796
        %v1463 = vmul.f32 %v1460, %v1462
        %v1464 = vadd.f32 %v1463, 0.0036580483
        %v1465 = vmul.f32 %v1460, %v1464
        %v1466 = vadd.f32 %v1465, 0.05243302
        %v1467 = vmul.f32 %v1460, %v1466
        %v1468 = vadd.f32 %v1467, 0.18741608
        %v1469 = vmul.f32 %v1460, %v1468
        %v1470 = vadd.f32 %v1469, 1.1283791
        %v1471 = vmul.f32 %v1092, %v1470
        %v1472 = vmul.f32 %v1460, 3.8918573e-05
        %v1473 = vadd.f32 %v1472, 0.001143296
        %v1474 = vmul.f32 %v1460, %v1473
        %v1475 = vadd.f32 %v1474, 0.014752088
        %v1476 = vmul.f32 %v1460, %v1475
        %v1477 = vadd.f32 %v1476, 0.112945676
        %v1478 = vmul.f32 %v1460, %v1477
        %v1479 = vadd.f32 %v1478, 0.4994258
        %v1480 = vmul.f32 %v1460, %v1479
        %v1481 = vadd.f32 %v1480, 1.0
        %v1482 = vrcp.pop %v1481
        %v1483 = vmul.f32 %v1481, %v1482
        %v1484 = vsub.f32 1.0, %v1483
        %v1485 = vmul.f32 %v1482, %v1484
        %v1486 = vadd.f32 %v1482, %v1485
        %vm1487 = vweird.f32 %v1481
        %vm1488 = vweird.f32 %v1482
        %vm1489 = vmor %vm1487, %vm1488
        %v1490 = vsel %vm1489, %v1482, %v1486
        %v1491 = vand.u32 2147483647, %v1481
        %vm1492 = vcmp.eq.f32.partialorder %v1491, 8.507059e+37
        %v1493 = vand.u32 %v1481, 2147483648
        %v1494 = vor.u32 1.1754944e-38, %v1493
        %v1495 = vsel %vm1492, %v1494, %v1490
        %v1496 = vmul.f32 %v1471, %v1495
        %v1497 = vmin.f32 %v1496, 1.0
        %v1498 = vmax.f32 %v1497, -1.0
        %v1499 = vmul.f32 %v1093, %v1093
        %v1500 = vmin.f32 16.0, %v1499
        %v1501 = vmul.f32 %v1500, 2.1237322e-06
        %v1502 = vadd.f32 %v1501, 0.00028619796
        %v1503 = vmul.f32 %v1500, %v1502
        %v1504 = vadd.f32 %v1503, 0.0036580483
        %v1505 = vmul.f32 %v1500, %v1504
        %v1506 = vadd.f32 %v1505, 0.05243302
        %v1507 = vmul.f32 %v1500, %v1506
        %v1508 = vadd.f32 %v1507, 0.18741608
        %v1509 = vmul.f32 %v1500, %v1508
        %v1510 = vadd.f32 %v1509, 1.1283791
        %v1511 = vmul.f32 %v1093, %v1510
        %v1512 = vmul.f32 %v1500, 3.8918573e-05
        %v1513 = vadd.f32 %v1512, 0.001143296
        %v1514 = vmul.f32 %v1500, %v1513
        %v1515 = vadd.f32 %v1514, 0.014752088
        %v1516 = vmul.f32 %v1500, %v1515
        %v1517 = vadd.f32 %v1516, 0.112945676
        %v1518 = vmul.f32 %v1500, %v1517
        %v1519 = vadd.f32 %v1518, 0.4994258
        %v1520 = vmul.f32 %v1500, %v1519
        %v1521 = vadd.f32 %v1520, 1.0
        %v1522 = vrcp.pop %v1521
        %v1523 = vmul.f32 %v1521, %v1522
        %v1524 = vsub.f32 1.0, %v1523
        %v1525 = vmul.f32 %v1522, %v1524
        %v1526 = vadd.f32 %v1522, %v1525
        %vm1527 = vweird.f32 %v1521
        %vm1528 = vweird.f32 %v1522
        %vm1529 = vmor %vm1527, %vm1528
        %v1530 = vsel %vm1529, %v1522, %v1526
        %v1531 = vand.u32 2147483647, %v1521
        %vm1532 = vcmp.eq.f32.partialorder %v1531, 8.507059e+37
        %v1533 = vand.u32 %v1521, 2147483648
        %v1534 = vor.u32 1.1754944e-38, %v1533
        %v1535 = vsel %vm1532, %v1534, %v1530
        %v1536 = vmul.f32 %v1511, %v1535
        %v1537 = vmin.f32 %v1536, 1.0
        %v1538 = vmax.f32 %v1537, -1.0
        %v1539 = vmul.f32 %v1094, %v1094
        %v1540 = vmin.f32 16.0, %v1539
        %v1541 = vmul.f32 %v1540, 2.1237322e-06
        %v1542 = vadd.f32 %v1541, 0.00028619796
        %v1543 = vmul.f32 %v1540, %v1542
        %v1544 = vadd.f32 %v1543, 0.0036580483
        %v1545 = vmul.f32 %v1540, %v1544
        %v1546 = vadd.f32 %v1545, 0.05243302
        %v1547 = vmul.f32 %v1540, %v1546
        %v1548 = vadd.f32 %v1547, 0.18741608
        %v1549 = vmul.f32 %v1540, %v1548
        %v1550 = vadd.f32 %v1549, 1.1283791
        %v1551 = vmul.f32 %v1094, %v1550
        %v1552 = vmul.f32 %v1540, 3.8918573e-05
        %v1553 = vadd.f32 %v1552, 0.001143296
        %v1554 = vmul.f32 %v1540, %v1553
        %v1555 = vadd.f32 %v1554, 0.014752088
        %v1556 = vmul.f32 %v1540, %v1555
        %v1557 = vadd.f32 %v1556, 0.112945676
        %v1558 = vmul.f32 %v1540, %v1557
        %v1559 = vadd.f32 %v1558, 0.4994258
        %v1560 = vmul.f32 %v1540, %v1559
        %v1561 = vadd.f32 %v1560, 1.0
        %v1562 = vrcp.pop %v1561
        %v1563 = vmul.f32 %v1561, %v1562
        %v1564 = vsub.f32 1.0, %v1563
        %v1565 = vmul.f32 %v1562, %v1564
        %v1566 = vadd.f32 %v1562, %v1565
        %vm1567 = vweird.f32 %v1561
        %vm1568 = vweird.f32 %v1562
        %vm1569 = vmor %vm1567, %vm1568
        %v1570 = vsel %vm1569, %v1562, %v1566
        %v1571 = vand.u32 2147483647, %v1561
        %vm1572 = vcmp.eq.f32.partialorder %v1571, 8.507059e+37
        %v1573 = vand.u32 %v1561, 2147483648
        %v1574 = vor.u32 1.1754944e-38, %v1573
        %v1575 = vsel %vm1572, %v1574, %v1570
        %v1576 = vmul.f32 %v1551, %v1575
        %v1577 = vmin.f32 %v1576, 1.0
        %v1578 = vmax.f32 %v1577, -1.0
        %v1579 = vmul.f32 %v1095, %v1095
        %v1580 = vmin.f32 16.0, %v1579
        %v1581 = vmul.f32 %v1580, 2.1237322e-06
        %v1582 = vadd.f32 %v1581, 0.00028619796
        %v1583 = vmul.f32 %v1580, %v1582
        %v1584 = vadd.f32 %v1583, 0.0036580483
        %v1585 = vmul.f32 %v1580, %v1584
        %v1586 = vadd.f32 %v1585, 0.05243302
        %v1587 = vmul.f32 %v1580, %v1586
        %v1588 = vadd.f32 %v1587, 0.18741608
        %v1589 = vmul.f32 %v1580, %v1588
        %v1590 = vadd.f32 %v1589, 1.1283791
        %v1591 = vmul.f32 %v1095, %v1590
        %v1592 = vmul.f32 %v1580, 3.8918573e-05
        %v1593 = vadd.f32 %v1592, 0.001143296
        %v1594 = vmul.f32 %v1580, %v1593
        %v1595 = vadd.f32 %v1594, 0.014752088
        %v1596 = vmul.f32 %v1580, %v1595
        %v1597 = vadd.f32 %v1596, 0.112945676
        %v1598 = vmul.f32 %v1580, %v1597
        %v1599 = vadd.f32 %v1598, 0.4994258
        %v1600 = vmul.f32 %v1580, %v1599
        %v1601 = vadd.f32 %v1600, 1.0
        %v1602 = vrcp.pop %v1601
        %v1603 = vmul.f32 %v1601, %v1602
        %v1604 = vsub.f32 1.0, %v1603
        %v1605 = vmul.f32 %v1602, %v1604
        %v1606 = vadd.f32 %v1602, %v1605
        %vm1607 = vweird.f32 %v1601
        %vm1608 = vweird.f32 %v1602
        %vm1609 = vmor %vm1607, %vm1608
        %v1610 = vsel %vm1609, %v1602, %v1606
        %v1611 = vand.u32 2147483647, %v1601
        %vm1612 = vcmp.eq.f32.partialorder %v1611, 8.507059e+37
        %v1613 = vand.u32 %v1601, 2147483648
        %v1614 = vor.u32 1.1754944e-38, %v1613
        %v1615 = vsel %vm1612, %v1614, %v1610
        %v1616 = vmul.f32 %v1591, %v1615
        %v1617 = vmin.f32 %v1616, 1.0
        %v1618 = vmax.f32 %v1617, -1.0
        %v1619 = vmul.f32 %v1096, %v1096
        %v1620 = vmin.f32 16.0, %v1619
        %v1621 = vmul.f32 %v1620, 2.1237322e-06
        %v1622 = vadd.f32 %v1621, 0.00028619796
        %v1623 = vmul.f32 %v1620, %v1622
        %v1624 = vadd.f32 %v1623, 0.0036580483
        %v1625 = vmul.f32 %v1620, %v1624
        %v1626 = vadd.f32 %v1625, 0.05243302
        %v1627 = vmul.f32 %v1620, %v1626
        %v1628 = vadd.f32 %v1627, 0.18741608
        %v1629 = vmul.f32 %v1620, %v1628
        %v1630 = vadd.f32 %v1629, 1.1283791
        %v1631 = vmul.f32 %v1096, %v1630
        %v1632 = vmul.f32 %v1620, 3.8918573e-05
        %v1633 = vadd.f32 %v1632, 0.001143296
        %v1634 = vmul.f32 %v1620, %v1633
        %v1635 = vadd.f32 %v1634, 0.014752088
        %v1636 = vmul.f32 %v1620, %v1635
        %v1637 = vadd.f32 %v1636, 0.112945676
        %v1638 = vmul.f32 %v1620, %v1637
        %v1639 = vadd.f32 %v1638, 0.4994258
        %v1640 = vmul.f32 %v1620, %v1639
        %v1641 = vadd.f32 %v1640, 1.0
        %v1642 = vrcp.pop %v1641
        %v1643 = vmul.f32 %v1641, %v1642
        %v1644 = vsub.f32 1.0, %v1643
        %v1645 = vmul.f32 %v1642, %v1644
        %v1646 = vadd.f32 %v1642, %v1645
        %vm1647 = vweird.f32 %v1641
        %vm1648 = vweird.f32 %v1642
        %vm1649 = vmor %vm1647, %vm1648
        %v1650 = vsel %vm1649, %v1642, %v1646
        %v1651 = vand.u32 2147483647, %v1641
        %vm1652 = vcmp.eq.f32.partialorder %v1651, 8.507059e+37
        %v1653 = vand.u32 %v1641, 2147483648
        %v1654 = vor.u32 1.1754944e-38, %v1653
        %v1655 = vsel %vm1652, %v1654, %v1650
        %v1656 = vmul.f32 %v1631, %v1655
        %v1657 = vmin.f32 %v1656, 1.0
        %v1658 = vmax.f32 %v1657, -1.0
        %v1659 = vmul.f32 %v1097, %v1097
        %v1660 = vmin.f32 16.0, %v1659
        %v1661 = vmul.f32 %v1660, 2.1237322e-06
        %v1662 = vadd.f32 %v1661, 0.00028619796
        %v1663 = vmul.f32 %v1660, %v1662
        %v1664 = vadd.f32 %v1663, 0.0036580483
        %v1665 = vmul.f32 %v1660, %v1664
        %v1666 = vadd.f32 %v1665, 0.05243302
        %v1667 = vmul.f32 %v1660, %v1666
        %v1668 = vadd.f32 %v1667, 0.18741608
        %v1669 = vmul.f32 %v1660, %v1668
        %v1670 = vadd.f32 %v1669, 1.1283791
        %v1671 = vmul.f32 %v1097, %v1670
        %v1672 = vmul.f32 %v1660, 3.8918573e-05
        %v1673 = vadd.f32 %v1672, 0.001143296
        %v1674 = vmul.f32 %v1660, %v1673
        %v1675 = vadd.f32 %v1674, 0.014752088
        %v1676 = vmul.f32 %v1660, %v1675
        %v1677 = vadd.f32 %v1676, 0.112945676
        %v1678 = vmul.f32 %v1660, %v1677
        %v1679 = vadd.f32 %v1678, 0.4994258
        %v1680 = vmul.f32 %v1660, %v1679
        %v1681 = vadd.f32 %v1680, 1.0
        %v1682 = vrcp.pop %v1681
        %v1683 = vmul.f32 %v1681, %v1682
        %v1684 = vsub.f32 1.0, %v1683
        %v1685 = vmul.f32 %v1682, %v1684
        %v1686 = vadd.f32 %v1682, %v1685
        %vm1687 = vweird.f32 %v1681
        %vm1688 = vweird.f32 %v1682
        %vm1689 = vmor %vm1687, %vm1688
        %v1690 = vsel %vm1689, %v1682, %v1686
        %v1691 = vand.u32 2147483647, %v1681
        %vm1692 = vcmp.eq.f32.partialorder %v1691, 8.507059e+37
        %v1693 = vand.u32 %v1681, 2147483648
        %v1694 = vor.u32 1.1754944e-38, %v1693
        %v1695 = vsel %vm1692, %v1694, %v1690
        %v1696 = vmul.f32 %v1671, %v1695
        %v1697 = vmin.f32 %v1696, 1.0
        %v1698 = vmax.f32 %v1697, -1.0
        %v1699 = vmul.f32 %v1098, %v1098
        %v1700 = vmin.f32 16.0, %v1699
        %v1701 = vmul.f32 %v1700, 2.1237322e-06
        %v1702 = vadd.f32 %v1701, 0.00028619796
        %v1703 = vmul.f32 %v1700, %v1702
        %v1704 = vadd.f32 %v1703, 0.0036580483
        %v1705 = vmul.f32 %v1700, %v1704
        %v1706 = vadd.f32 %v1705, 0.05243302
        %v1707 = vmul.f32 %v1700, %v1706
        %v1708 = vadd.f32 %v1707, 0.18741608
        %v1709 = vmul.f32 %v1700, %v1708
        %v1710 = vadd.f32 %v1709, 1.1283791
        %v1711 = vmul.f32 %v1098, %v1710
        %v1712 = vmul.f32 %v1700, 3.8918573e-05
        %v1713 = vadd.f32 %v1712, 0.001143296
        %v1714 = vmul.f32 %v1700, %v1713
        %v1715 = vadd.f32 %v1714, 0.014752088
        %v1716 = vmul.f32 %v1700, %v1715
        %v1717 = vadd.f32 %v1716, 0.112945676
        %v1718 = vmul.f32 %v1700, %v1717
        %v1719 = vadd.f32 %v1718, 0.4994258
        %v1720 = vmul.f32 %v1700, %v1719
        %v1721 = vadd.f32 %v1720, 1.0
        %v1722 = vrcp.pop %v1721
        %v1723 = vmul.f32 %v1721, %v1722
        %v1724 = vsub.f32 1.0, %v1723
        %v1725 = vmul.f32 %v1722, %v1724
        %v1726 = vadd.f32 %v1722, %v1725
        %vm1727 = vweird.f32 %v1721
        %vm1728 = vweird.f32 %v1722
        %vm1729 = vmor %vm1727, %vm1728
        %v1730 = vsel %vm1729, %v1722, %v1726
        %v1731 = vand.u32 2147483647, %v1721
        %vm1732 = vcmp.eq.f32.partialorder %v1731, 8.507059e+37
        %v1733 = vand.u32 %v1721, 2147483648
        %v1734 = vor.u32 1.1754944e-38, %v1733
        %v1735 = vsel %vm1732, %v1734, %v1730
        %v1736 = vmul.f32 %v1711, %v1735
        %v1737 = vmin.f32 %v1736, 1.0
        %v1738 = vmax.f32 %v1737, -1.0
        %v1739 = vadd.f32 %v1138, 1.0
        %v1740 = vadd.f32 %v1178, 1.0
        %v1741 = vadd.f32 %v1218, 1.0
        %v1742 = vadd.f32 %v1258, 1.0
        %v1743 = vadd.f32 %v1298, 1.0
        %v1744 = vadd.f32 %v1338, 1.0
        %v1745 = vadd.f32 %v1378, 1.0
        %v1746 = vadd.f32 %v1418, 1.0
        %v1747 = vadd.f32 %v1458, 1.0
        %v1748 = vadd.f32 %v1498, 1.0
        %v1749 = vadd.f32 %v1538, 1.0
        %v1750 = vadd.f32 %v1578, 1.0
        %v1751 = vadd.f32 %v1618, 1.0
        %v1752 = vadd.f32 %v1658, 1.0
        %v1753 = vadd.f32 %v1698, 1.0
        %v1754 = vadd.f32 %v1738, 1.0
        %v1755 = vmul.f32 %v1067, %v1739
        %v1756 = vmul.f32 %v1068, %v1740
        %v1757 = vmul.f32 %v1069, %v1741
        %v1758 = vmul.f32 %v1070, %v1742
        %v1759 = vmul.f32 %v1071, %v1743
        %v1760 = vmul.f32 %v1072, %v1744
        %v1761 = vmul.f32 %v1073, %v1745
        %v1762 = vmul.f32 %v1074, %v1746
        %v1763 = vmul.f32 %v1075, %v1747
        %v1764 = vmul.f32 %v1076, %v1748
        %v1765 = vmul.f32 %v1077, %v1749
        %v1766 = vmul.f32 %v1078, %v1750
        %v1767 = vmul.f32 %v1079, %v1751
        %v1768 = vmul.f32 %v1080, %v1752
        %v1769 = vmul.f32 %v1081, %v1753
        %v1770 = vmul.f32 %v1082, %v1754
        %v1771 = vld [vmem:[%s434] sm:$0xff]
        %v1772 = vld [vmem:[%s434 + $0x8] sm:$0xff]
        %v1773 = vld [vmem:[%s434 + $0x10] sm:$0xff]
        %v1774 = vld [vmem:[%s434 + $0x18] sm:$0xff]
        %v1775 = vld [vmem:[%s434 + $0x20] sm:$0xff]
        %v1776 = vld [vmem:[%s434 + $0x28] sm:$0xff]
        %v1777 = vld [vmem:[%s434 + $0x30] sm:$0xff]
        %v1778 = vld [vmem:[%s434 + $0x38] sm:$0xff]
        %v1779 = vld [vmem:[%s434 + $0x40] sm:$0xff]
        %v1780 = vld [vmem:[%s434 + $0x48] sm:$0xff]
        %v1781 = vld [vmem:[%s434 + $0x50] sm:$0xff]
        %v1782 = vld [vmem:[%s434 + $0x58] sm:$0xff]
        %v1783 = vld [vmem:[%s434 + $0x60] sm:$0xff]
        %v1784 = vld [vmem:[%s434 + $0x68] sm:$0xff]
        %v1785 = vld [vmem:[%s434 + $0x70] sm:$0xff]
        %v1786 = vld [vmem:[%s434 + $0x78] sm:$0xff]
        %v1787 = vpack.c.bf16 %v1756, %v1755
        %v1788 = vpack.c.bf16 %v1758, %v1757
        %v1789 = vpack.c.bf16 %v1760, %v1759
        %v1790 = vpack.c.bf16 %v1762, %v1761
        %v1791 = vpack.c.bf16 %v1764, %v1763
        %v1792 = vpack.c.bf16 %v1766, %v1765
        %v1793 = vpack.c.bf16 %v1768, %v1767
        %v1794 = vpack.c.bf16 %v1770, %v1769
        %v1795 = vld [vmem:[%s448] sm:$0xf]
        %v1796 = vld [vmem:[%s448 + $0x4] sm:$0xf]
        %v1797 = vld [vmem:[%s448 + $0x8] sm:$0xf]
        %v1798 = vld [vmem:[%s448 + $0xc] sm:$0xf]
        %v1799 = vld [vmem:[%s448 + $0x10] sm:$0xf]
        %v1800 = vld [vmem:[%s448 + $0x14] sm:$0xf]
        %v1801 = vld [vmem:[%s448 + $0x18] sm:$0xf]
        %v1802 = vld [vmem:[%s448 + $0x1c] sm:$0xf]
        %v1803 = vld [vmem:[%s448 + $0x20] sm:$0xf]
        %v1804 = vld [vmem:[%s448 + $0x24] sm:$0xf]
        %v1805 = vld [vmem:[%s448 + $0x28] sm:$0xf]
        %v1806 = vld [vmem:[%s448 + $0x2c] sm:$0xf]
        %v1807 = vld [vmem:[%s448 + $0x30] sm:$0xf]
        %v1808 = vld [vmem:[%s448 + $0x34] sm:$0xf]
        %v1809 = vld [vmem:[%s448 + $0x38] sm:$0xf]
        %v1810 = vld [vmem:[%s448 + $0x3c] sm:$0xf]
        %v1827 = vunpack.c.l.b16 %v1795
        %v1828 = vunpack.c.l.b16 %v1796
        %v1829 = vunpack.c.l.b16 %v1797
        %v1830 = vunpack.c.l.b16 %v1798
        %v1831 = vunpack.c.l.b16 %v1799
        %v1832 = vunpack.c.l.b16 %v1800
        %v1833 = vunpack.c.l.b16 %v1801
        %v1834 = vunpack.c.l.b16 %v1802
        %v1835 = vunpack.c.l.b16 %v1803
        %v1836 = vunpack.c.l.b16 %v1804
        %v1837 = vunpack.c.l.b16 %v1805
        %v1838 = vunpack.c.l.b16 %v1806
        %v1839 = vunpack.c.l.b16 %v1807
        %v1840 = vunpack.c.l.b16 %v1808
        %v1841 = vunpack.c.l.b16 %v1809
        %v1842 = vunpack.c.l.b16 %v1810
        %v1843 = vpack.c.b16 %v1828, %v1827
        %v1844 = vpack.c.b16 %v1830, %v1829
        %v1845 = vpack.c.b16 %v1832, %v1831
        %v1846 = vpack.c.b16 %v1834, %v1833
        %v1847 = vpack.c.b16 %v1836, %v1835
        %v1848 = vpack.c.b16 %v1838, %v1837
        %v1849 = vpack.c.b16 %v1840, %v1839
        %v1850 = vpack.c.b16 %v1842, %v1841
        %1859 = vmatpush.bf16.msra.mxu0 %v1850
        %1860 = vmatpush.bf16.msra.mxu0 %v1849
        %1861 = vmatpush.bf16.msra.mxu0 %v1848
        %1862 = vmatpush.bf16.msra.mxu0 %v1847
        %1863 = vmatpush.bf16.msra.mxu0 %v1846
        %1864 = vmatpush.bf16.msra.mxu0 %v1845
        %1865 = vmatpush.bf16.msra.mxu0 %v1844
        %1866 = vmatpush.bf16.msra.mxu0 %v1843
        %1867 = vmatmul.bf16.gmra.mxu0 %v1787
        %v1868 = vpop.f32.mrf.mxu0
        %v1869 = vadd.f32 0.0, %v1868
        %v1870 = vpop.f32.mrf.mxu0
        %v1871 = vadd.f32 0.0, %v1870
        %1872 = vmatmul.bf16.gmra.mxu0 %v1788
        %v1873 = vpop.f32.mrf.mxu0
        %v1874 = vadd.f32 0.0, %v1873
        %v1875 = vpop.f32.mrf.mxu0
        %v1876 = vadd.f32 0.0, %v1875
        %1877 = vmatmul.bf16.gmra.mxu0 %v1789
        %v1878 = vpop.f32.mrf.mxu0
        %v1879 = vadd.f32 0.0, %v1878
        %v1880 = vpop.f32.mrf.mxu0
        %v1881 = vadd.f32 0.0, %v1880
        %1882 = vmatmul.bf16.gmra.mxu0 %v1790
        %v1883 = vpop.f32.mrf.mxu0
        %v1884 = vadd.f32 0.0, %v1883
        %v1885 = vpop.f32.mrf.mxu0
        %v1886 = vadd.f32 0.0, %v1885
        %1887 = vmatmul.bf16.gmra.mxu0 %v1791
        %v1888 = vpop.f32.mrf.mxu0
        %v1889 = vadd.f32 0.0, %v1888
        %v1890 = vpop.f32.mrf.mxu0
        %v1891 = vadd.f32 0.0, %v1890
        %1892 = vmatmul.bf16.gmra.mxu0 %v1792
        %v1893 = vpop.f32.mrf.mxu0
        %v1894 = vadd.f32 0.0, %v1893
        %v1895 = vpop.f32.mrf.mxu0
        %v1896 = vadd.f32 0.0, %v1895
        %1897 = vmatmul.bf16.gmra.mxu0 %v1793
        %v1898 = vpop.f32.mrf.mxu0
        %v1899 = vadd.f32 0.0, %v1898
        %v1900 = vpop.f32.mrf.mxu0
        %v1901 = vadd.f32 0.0, %v1900
        %1902 = vmatmul.bf16.gmra.mxu0 %v1794
        %v1903 = vpop.f32.mrf.mxu0
        %v1904 = vadd.f32 0.0, %v1903
        %v1905 = vpop.f32.mrf.mxu0
        %v1906 = vadd.f32 0.0, %v1905
        %1907 = vdwg.mxu0
        %v1908 = vadd.f32 %v1771, %v1869
        %v1909 = vadd.f32 %v1772, %v1871
        %v1910 = vadd.f32 %v1773, %v1874
        %v1911 = vadd.f32 %v1774, %v1876
        %v1912 = vadd.f32 %v1775, %v1879
        %v1913 = vadd.f32 %v1776, %v1881
        %v1914 = vadd.f32 %v1777, %v1884
        %v1915 = vadd.f32 %v1778, %v1886
        %v1916 = vadd.f32 %v1779, %v1889
        %v1917 = vadd.f32 %v1780, %v1891
        %v1918 = vadd.f32 %v1781, %v1894
        %v1919 = vadd.f32 %v1782, %v1896
        %v1920 = vadd.f32 %v1783, %v1899
        %v1921 = vadd.f32 %v1784, %v1901
        %v1922 = vadd.f32 %v1785, %v1904
        %v1923 = vadd.f32 %v1786, %v1906
        %1924 = vst [vmem:[%s434] sm:$0xff] %v1908
        %1925 = vst [vmem:[%s434 + $0x8] sm:$0xff] %v1909
        %1926 = vst [vmem:[%s434 + $0x10] sm:$0xff] %v1910
        %1927 = vst [vmem:[%s434 + $0x18] sm:$0xff] %v1911
        %1928 = vst [vmem:[%s434 + $0x20] sm:$0xff] %v1912
        %1929 = vst [vmem:[%s434 + $0x28] sm:$0xff] %v1913
        %1930 = vst [vmem:[%s434 + $0x30] sm:$0xff] %v1914
        %1931 = vst [vmem:[%s434 + $0x38] sm:$0xff] %v1915
        %1932 = vst [vmem:[%s434 + $0x40] sm:$0xff] %v1916
        %1933 = vst [vmem:[%s434 + $0x48] sm:$0xff] %v1917
        %1934 = vst [vmem:[%s434 + $0x50] sm:$0xff] %v1918
        %1935 = vst [vmem:[%s434 + $0x58] sm:$0xff] %v1919
        %1936 = vst [vmem:[%s434 + $0x60] sm:$0xff] %v1920
        %1937 = vst [vmem:[%s434 + $0x68] sm:$0xff] %v1921
        %1938 = vst [vmem:[%s434 + $0x70] sm:$0xff] %v1922
        %1939 = vst [vmem:[%s434 + $0x78] sm:$0xff] %v1923
        %p1940 = scmp.eq.s32.totalorder %s26, 1
        // Predicated region
        $region94: #{ffn_pallas.1} parent=84 // pred_check
          %p1941 = pneg %p1940
        $region95: #{ffn_pallas.1} parent=84 // pred_check_branch
          %1943 = sbr.rel (%p1941) target = $region97
        $region96: #{ffn_pallas.1} parent=84 // pred_region
          %v1944 = vld [vmem:[%s434] sm:$0xff]
          %v1945 = vld [vmem:[%s434 + $0x8] sm:$0xff]
          %v1946 = vld [vmem:[%s434 + $0x10] sm:$0xff]
          %v1947 = vld [vmem:[%s434 + $0x18] sm:$0xff]
          %v1948 = vld [vmem:[%s434 + $0x20] sm:$0xff]
          %v1949 = vld [vmem:[%s434 + $0x28] sm:$0xff]
          %v1950 = vld [vmem:[%s434 + $0x30] sm:$0xff]
          %v1951 = vld [vmem:[%s434 + $0x38] sm:$0xff]
          %v1952 = vld [vmem:[%s434 + $0x40] sm:$0xff]
          %v1953 = vld [vmem:[%s434 + $0x48] sm:$0xff]
          %v1954 = vld [vmem:[%s434 + $0x50] sm:$0xff]
          %v1955 = vld [vmem:[%s434 + $0x58] sm:$0xff]
          %v1956 = vld [vmem:[%s434 + $0x60] sm:$0xff]
          %v1957 = vld [vmem:[%s434 + $0x68] sm:$0xff]
          %v1958 = vld [vmem:[%s434 + $0x70] sm:$0xff]
          %v1959 = vld [vmem:[%s434 + $0x78] sm:$0xff]
          %v1960 = vld [vmem:[%s6] sm:$0x1]
          %v1962 = vperm.slane %v1960, 0
          %v1964 = vadd.f32 %v1944, %v1962
          %v1965 = vadd.f32 %v1945, %v1962
          %v1966 = vadd.f32 %v1946, %v1962
          %v1967 = vadd.f32 %v1947, %v1962
          %v1968 = vadd.f32 %v1948, %v1962
          %v1969 = vadd.f32 %v1949, %v1962
          %v1970 = vadd.f32 %v1950, %v1962
          %v1971 = vadd.f32 %v1951, %v1962
          %v1972 = vadd.f32 %v1952, %v1962
          %v1973 = vadd.f32 %v1953, %v1962
          %v1974 = vadd.f32 %v1954, %v1962
          %v1975 = vadd.f32 %v1955, %v1962
          %v1976 = vadd.f32 %v1956, %v1962
          %v1977 = vadd.f32 %v1957, %v1962
          %v1978 = vadd.f32 %v1958, %v1962
          %v1979 = vadd.f32 %v1959, %v1962
          %1980 = vst [vmem:[%s434] sm:$0xff] %v1964
          %1981 = vst [vmem:[%s434 + $0x8] sm:$0xff] %v1965
          %1982 = vst [vmem:[%s434 + $0x10] sm:$0xff] %v1966
          %1983 = vst [vmem:[%s434 + $0x18] sm:$0xff] %v1967
          %1984 = vst [vmem:[%s434 + $0x20] sm:$0xff] %v1968
          %1985 = vst [vmem:[%s434 + $0x28] sm:$0xff] %v1969
          %1986 = vst [vmem:[%s434 + $0x30] sm:$0xff] %v1970
          %1987 = vst [vmem:[%s434 + $0x38] sm:$0xff] %v1971
          %1988 = vst [vmem:[%s434 + $0x40] sm:$0xff] %v1972
          %1989 = vst [vmem:[%s434 + $0x48] sm:$0xff] %v1973
          %1990 = vst [vmem:[%s434 + $0x50] sm:$0xff] %v1974
          %1991 = vst [vmem:[%s434 + $0x58] sm:$0xff] %v1975
          %1992 = vst [vmem:[%s434 + $0x60] sm:$0xff] %v1976
          %1993 = vst [vmem:[%s434 + $0x68] sm:$0xff] %v1977
          %1994 = vst [vmem:[%s434 + $0x70] sm:$0xff] %v1978
          %1995 = vst [vmem:[%s434 + $0x78] sm:$0xff] %v1979
        $region97: #{ffn_pallas.1} parent=84 // pred_fallthru
          _
        %s1996 = sand.u32 %s208, 1
        %s1997 = scalar_lea.sflag [#allocation5], %s1996
        %s1998 = sand.u32 %s208, 1
        %s1999 = smul.addr %s1998, 128
        %s2000 = scalar_lea.vmem [#allocation4], %s1999
        // Predicated region
        $region98: #{ffn_pallas.1} parent=84 // pred_check
          %p2001 = pneg %p218
        $region99: #{ffn_pallas.1} parent=84 // pred_check_branch
          %2003 = sbr.rel (%p2001) target = $region101
        $region100: #{ffn_pallas.1} parent=84 // pred_region
          %s2004 = smul.u32 16, %s25
          %2006 = vsyncadd %s1997, 0
          %s2007 = smul.addr %s2004, 8
          %s2008 = scalar_lea.hbm %s7, %s2007
          %s2009 = sshll.u32 %s2000, 4
          %s2010 = int_to_ptr.vmem [resolvable:$true] %s2009
          %s2011 = sshll.u32 %s2008, 4
          %s2012 = int_to_ptr.hbm [resolvable:$true] %s2011
          %2017 = dma.vmem_to_hbm [thread:$0]  %s2010, 2048, %s2012, %s1997, 128, 128, 8
        $region101: #{ffn_pallas.1} parent=84 // pred_fallthru
          _
      $region85: #{ffn_pallas.1} parent=5 // pred_fallthru
        _
      %p2018 = scmp.le.s32.totalorder 2, %s16
      // Predicated region
      $region102: #{ffn_pallas.1} parent=5 // pred_check
        %p2019 = pneg %p2018
      $region103: #{ffn_pallas.1} parent=5 // pred_check_branch
        %2021 = sbr.rel (%p2019) target = $region105
      $region104: #{ffn_pallas.1} parent=5 // pred_region
        %s2022 = ssub.s32 %s16, 2
        // Predicated region
        $region106: #{ffn_pallas.1} parent=104 // pred_check
          %p2023 = pneg %p224
        $region107: #{ffn_pallas.1} parent=104 // pred_check_branch
          %2025 = sbr.rel (%p2023) target = $region109
        $region108: #{ffn_pallas.1} parent=104 // pred_region
          %s2026 = sand.u32 %s209, 1
          %s2027 = scalar_lea.sflag [#allocation5], %s2026
          %s2028 = sand.u32 %s209, 1
          %s2029 = smul.addr %s2028, 128
          %s2030 = scalar_lea.vmem [#allocation4], %s2029
          %2032 = dma.done %s2027, 2048
        $region109: #{ffn_pallas.1} parent=104 // pred_fallthru
          _
      $region105: #{ffn_pallas.1} parent=5 // pred_fallthru
        _
    $region6: #{ffn_pallas.1} parent=1 // loop_footer
      %s20 = sadd.s32 1, %s16
    $region7: #{ffn_pallas.1} parent=1 // loop_footer_branch
      %15 = sbr.rel target = $region3
    $region8: #{ffn_pallas.1} parent=1 // loop_exit
      _
    %2033 = vsyncpa [#allocation5], 1
    %s2034 = scalar_lea.sflag [#allocation5], 1
    %2035 = vsyncpa %s2034, 1

</llo_original>
